<compile_context>
chip_gen: v5e
topology: v5e:2x2
jax: 0.10.0
libtpu: 0.0.40
codegen_flags: <defaults>
</compile_context>

<pallas_src>
import functools

import jax
import jax.numpy as jnp
from jax import lax
from jax.experimental import pallas as pl
from jax.experimental.pallas import tpu as pltpu


# ----------------------------------------------------------------------------
# Fused Pallas kernel: n_layers LSTM + FC, whole model resident in VMEM.
# ----------------------------------------------------------------------------
def fused_lstm_fc_kernel(*refs, n_layers):
    """Ref layout:
        refs[0]                        : emb  (T, Bp, E)   embedded sequence (time-major)
        refs[1 + 3*l + 0]              : w_ih_t (in_dim, 4H) for layer l
        refs[1 + 3*l + 1]              : w_hh_t (H, 4H)      for layer l
        refs[1 + 3*l + 2]              : b      (1, 4H)      (b_ih + b_hh)   for layer l
        refs[1 + 3*n_layers + 0]       : fc_w_t (H, O)
        refs[1 + 3*n_layers + 1]       : fc_b   (1, O)
        refs[1 + 3*n_layers + 2]       : out    (Bp, O)      (output ref)
        refs[1 + 3*n_layers + 3]       : hseq   (T, Bp, H)   VMEM scratch (inter-layer seq)
    Gate order (PyTorch): i, f, g, o.
    """
    emb_ref = refs[0]
    layer_refs = refs[1:1 + 3 * n_layers]
    fc_w_ref = refs[1 + 3 * n_layers]
    fc_b_ref = refs[2 + 3 * n_layers]
    out_ref = refs[3 + 3 * n_layers]
    hseq_scr = refs[4 + 3 * n_layers]

    T, Bp, _ = emb_ref.shape
    H = hseq_scr.shape[-1]

    def run_layer(x_flat, w_ih_ref, w_hh_ref, b_ref, store_seq):
        # Hoisted input projection for the whole sequence: one well-shaped matmul.
        g_all = (
            jnp.dot(x_flat, w_ih_ref[...], preferred_element_type=jnp.float32)
            + b_ref[...]
        ).reshape(T, Bp, 4 * H)
        w_hh = w_hh_ref[...]

        h = jnp.zeros((Bp, H), jnp.float32)
        c = jnp.zeros((Bp, H), jnp.float32)
        # T is small and static: fully unrolled recurrence (only h @ W_hh per step).
        for t in range(T):
            gates = g_all[t] + jnp.dot(h, w_hh, preferred_element_type=jnp.float32)
            sig = jax.nn.sigmoid(gates)      # full-vreg EUP op
            th = jnp.tanh(gates)             # full-vreg EUP op
            i_g = sig[:, 0 * H:1 * H]
            f_g = sig[:, 1 * H:2 * H]
            g_g = th[:, 2 * H:3 * H]
            o_g = sig[:, 3 * H:4 * H]
            c = f_g * c + i_g * g_g
            h = o_g * jnp.tanh(c)
            if store_seq:
                hseq_scr[t] = h              # only needed as next layer's input
        return h

    x_flat = emb_ref[...].reshape(T * Bp, emb_ref.shape[-1])
    h_last = None
    for layer in range(n_layers):
        w_ih_ref, w_hh_ref, b_ref = layer_refs[3 * layer:3 * layer + 3]
        is_last = layer == n_layers - 1
        h_last = run_layer(x_flat, w_ih_ref, w_hh_ref, b_ref, store_seq=not is_last)
        if not is_last:
            x_flat = hseq_scr[...].reshape(T * Bp, H)

    # FC on the final hidden state only (hidden[-1] in PyTorch terms).
    out_ref[...] = (
        jnp.dot(h_last, fc_w_ref[...], preferred_element_type=jnp.float32)
        + fc_b_ref[...]
    )


# ----------------------------------------------------------------------------
# Wrapper
# ----------------------------------------------------------------------------
def fused_forward_pallas(emb_tm, params):
    """emb_tm: (T, Bp, E) time-major, batch already padded to a multiple of 8."""
    T, Bp, E = emb_tm.shape
    layers = params["lstm"]
    n_layers = len(layers)
    H = layers[0]["w_hh_t"].shape[0]
    O = params["fc_w_t"].shape[1]

    args = [emb_tm]
    in_specs = [pl.BlockSpec((T, Bp, E), lambda i: (0, 0, 0))]
    for layer in layers:
        in_dim = layer["w_ih_t"].shape[0]
        args += [layer["w_ih_t"], layer["w_hh_t"], layer["b"]]
        in_specs += [
            pl.BlockSpec((in_dim, 4 * H), lambda i: (0, 0)),
            pl.BlockSpec((H, 4 * H), lambda i: (0, 0)),
            pl.BlockSpec((1, 4 * H), lambda i: (0, 0)),
        ]
    args += [params["fc_w_t"], params["fc_b"]]
    in_specs += [
        pl.BlockSpec((H, O), lambda i: (0, 0)),
        pl.BlockSpec((1, O), lambda i: (0, 0)),
    ]

    kernel = functools.partial(fused_lstm_fc_kernel, n_layers=n_layers)

    return pl.pallas_call(
        kernel,
        out_shape=jax.ShapeDtypeStruct((Bp, O), jnp.float32),
        grid_spec=pltpu.PrefetchScalarGridSpec(
            num_scalar_prefetch=0,
            grid=(1,),
            in_specs=in_specs,
            out_specs=pl.BlockSpec((Bp, O), lambda i: (0, 0)),
            scratch_shapes=[pltpu.VMEM((T, Bp, H), jnp.float32)],
        ),
        compiler_params=pltpu.CompilerParams(
            dimension_semantics=("arbitrary",),
        ),
        # TODO(synk): for large hidden_dim on v6e/v7x, cast weights to bf16 and
        # set vmem_limit_bytes / add a "parallel" batch grid axis (2-TC split).
    )(*args)


def emotion_classifier_forward(text, params):
    """Full forward pass. text: (B, T) int32 token ids (batch_first)."""
    B, T = text.shape
    # Embedding gather is glue — done in plain JAX, directly in time-major
    # layout (no separate transpose of a materialized (B,T,E) tensor).
    emb_tm = params["embedding"][text.T]                 # (T, B, E) float32
    # Dropout: identity (eval mode).

    # Pad batch to a multiple of 8 so every vreg / MXU row is sublane-dense.
    Bp = ((B + 7) // 8) * 8
    if Bp != B:
        emb_tm = jnp.pad(emb_tm, ((0, 0), (0, Bp - B), (0, 0)))

    out = fused_forward_pallas(emb_tm, params)           # (Bp, O)
    return out[:B]


# ----------------------------------------------------------------------------
# Pure-JAX reference (for correctness checking)
# ----------------------------------------------------------------------------
def lstm_layer_ref(x_seq, w_ih_t, w_hh_t, b):
    T, B, E = x_seq.shape
    H = w_hh_t.shape[0]

    def step(carry, x_t):
        h, c = carry
        gates = x_t @ w_ih_t + h @ w_hh_t + b
        i_g = jax.nn.sigmoid(gates[:, 0 * H:1 * H])
        f_g = jax.nn.sigmoid(gates[:, 1 * H:2 * H])
        g_g = jnp.tanh(gates[:, 2 * H:3 * H])
        o_g = jax.nn.sigmoid(gates[:, 3 * H:4 * H])
        c_new = f_g * c + i_g * g_g
        h_new = o_g * jnp.tanh(c_new)
        return (h_new, c_new), h_new

    init = (jnp.zeros((B, H), jnp.float32), jnp.zeros((B, H), jnp.float32))
    _, hs = lax.scan(step, init, x_seq)
    return hs


def forward_ref(text, params):
    x = jnp.transpose(params["embedding"][text], (1, 0, 2))
    for layer in params["lstm"]:
        x = lstm_layer_ref(x, layer["w_ih_t"], layer["w_hh_t"], layer["b"])
    return x[-1] @ params["fc_w_t"] + params["fc_b"]


# ----------------------------------------------------------------------------
# Parameter construction (deterministic, PyTorch-shaped)
# ----------------------------------------------------------------------------
def init_params(key, vocab_size, embedding_dim, hidden_dim, output_dim, n_layers):
    keys = jax.random.split(key, 2 + 4 * n_layers + 2)
    ki = iter(keys)

    params = {}
    params["embedding"] = jax.random.normal(
        next(ki), (vocab_size, embedding_dim), jnp.float32
    )

    lstm_layers = []
    bound = 1.0 / jnp.sqrt(hidden_dim)
    for layer in range(n_layers):
        in_dim = embedding_dim if layer == 0 else hidden_dim
        # PyTorch shapes: weight_ih (4H, in), weight_hh (4H, H), biases (4H,)
        w_ih = jax.random.uniform(next(ki), (4 * hidden_dim, in_dim),
                                  jnp.float32, -bound, bound)
        w_hh = jax.random.uniform(next(ki), (4 * hidden_dim, hidden_dim),
                                  jnp.float32, -bound, bound)
        b_ih = jax.random.uniform(next(ki), (4 * hidden_dim,),
                                  jnp.float32, -bound, bound)
        b_hh = jax.random.uniform(next(ki), (4 * hidden_dim,),
                                  jnp.float32, -bound, bound)
        lstm_layers.append({
            "w_ih_t": w_ih.T,                       # (in, 4H)
            "w_hh_t": w_hh.T,                       # (H, 4H)
            "b": (b_ih + b_hh)[None, :],            # (1, 4H)
        })
    params["lstm"] = lstm_layers

    fc_bound = 1.0 / jnp.sqrt(hidden_dim)
    fc_w = jax.random.uniform(next(ki), (output_dim, hidden_dim),
                              jnp.float32, -fc_bound, fc_bound)
    fc_b = jax.random.uniform(next(ki), (output_dim,),
                              jnp.float32, -fc_bound, fc_bound)
    params["fc_w_t"] = fc_w.T                       # (H, O)
    params["fc_b"] = fc_b[None, :]                  # (1, O)
    return params


# ----------------------------------------------------------------------------
# Main
# ----------------------------------------------------------------------------
if __name__ == "__main__":
    vocab_size = 50
    embedding_dim = 32
    hidden_dim = 32
    output_dim = 4
    n_layers = 2
    batch = 2
    seq_len = 8

    key = jax.random.PRNGKey(0)
    k_params, k_text = jax.random.split(key)
    params = init_params(k_params, vocab_size, embedding_dim, hidden_dim,
                         output_dim, n_layers)
    text = jax.random.randint(k_text, (batch, seq_len), 0, vocab_size,
                              dtype=jnp.int32)

    out = emotion_classifier_forward(text, params)
    out = jax.block_until_ready(out)

    ref = jax.block_until_ready(forward_ref(text, params))
    assert out.shape == (batch, output_dim), out.shape
    assert jnp.allclose(out, ref, atol=1e-5, rtol=1e-5), (out, ref)

    print("KERNEL_OK")
</pallas_src>

<mosaic_0001>
module attributes {stable_mosaic.version = 11 : i64} {
  func.func @fused_lstm_fc_kernel(%arg0: i32, %arg1: memref<8x8x32xf32, #tpu.memory_space<vmem>>, %arg2: memref<32x128xf32, #tpu.memory_space<vmem>>, %arg3: memref<32x128xf32, #tpu.memory_space<vmem>>, %arg4: memref<1x128xf32, #tpu.memory_space<vmem>>, %arg5: memref<32x128xf32, #tpu.memory_space<vmem>>, %arg6: memref<32x128xf32, #tpu.memory_space<vmem>>, %arg7: memref<1x128xf32, #tpu.memory_space<vmem>>, %arg8: memref<32x4xf32, #tpu.memory_space<vmem>>, %arg9: memref<1x4xf32, #tpu.memory_space<vmem>>, %arg10: memref<8x4xf32, #tpu.memory_space<vmem>>, %arg11: memref<8x8x32xf32, #tpu.memory_space<vmem>>) attributes {dimension_semantics = [#tpu.dimension_semantics<arbitrary>], iteration_bounds = array<i64: 1>, scalar_prefetch = 0 : i64, scratch_operands = 1 : i64, tpu.core_type = #tpu.core_type<tc>, window_params = [{pipeline_mode = #tpu.pipeline_mode<synchronous>, transform_indices = @transform_0, window_bounds = array<i64: 8, 8, 32>}, {pipeline_mode = #tpu.pipeline_mode<synchronous>, transform_indices = @transform_1, window_bounds = array<i64: 32, 128>}, {pipeline_mode = #tpu.pipeline_mode<synchronous>, transform_indices = @transform_2, window_bounds = array<i64: 32, 128>}, {pipeline_mode = #tpu.pipeline_mode<synchronous>, transform_indices = @transform_3, window_bounds = array<i64: 1, 128>}, {pipeline_mode = #tpu.pipeline_mode<synchronous>, transform_indices = @transform_4, window_bounds = array<i64: 32, 128>}, {pipeline_mode = #tpu.pipeline_mode<synchronous>, transform_indices = @transform_5, window_bounds = array<i64: 32, 128>}, {pipeline_mode = #tpu.pipeline_mode<synchronous>, transform_indices = @transform_6, window_bounds = array<i64: 1, 128>}, {pipeline_mode = #tpu.pipeline_mode<synchronous>, transform_indices = @transform_7, window_bounds = array<i64: 32, 4>}, {pipeline_mode = #tpu.pipeline_mode<synchronous>, transform_indices = @transform_8, window_bounds = array<i64: 1, 4>}, {pipeline_mode = #tpu.pipeline_mode<synchronous>, transform_indices = @transform_9, window_bounds = array<i64: 8, 4>}]} {
    %c0 = arith.constant 0 : index
    %c0_0 = arith.constant 0 : index
    %c0_1 = arith.constant 0 : index
    %0 = vector.load %arg1[%c0, %c0_0, %c0_1] : memref<8x8x32xf32, #tpu.memory_space<vmem>>, vector<8x8x32xf32>
    %1 = vector.shape_cast %0 : vector<8x8x32xf32> to vector<64x32xf32>
    %c0_2 = arith.constant 0 : index
    %c0_3 = arith.constant 0 : index
    %2 = vector.load %arg2[%c0_2, %c0_3] : memref<32x128xf32, #tpu.memory_space<vmem>>, vector<32x128xf32>
    %cst = arith.constant dense<0.000000e+00> : vector<64x128xf32>
    %3 = tpu.matmul %1, %2, %cst {dimension_numbers = #tpu.dot_dimension_numbers<[1], [0], [0], [1], [0, 0, 1, 1], [], []>} : vector<64x32xf32>, vector<32x128xf32>, vector<64x128xf32> -> vector<64x128xf32>
    %c0_4 = arith.constant 0 : index
    %c0_5 = arith.constant 0 : index
    %4 = vector.load %arg4[%c0_4, %c0_5] : memref<1x128xf32, #tpu.memory_space<vmem>>, vector<1x128xf32>
    %5 = vector.broadcast %4 : vector<1x128xf32> to vector<64x128xf32>
    %6 = arith.addf %3, %5 : vector<64x128xf32>
    %7 = vector.shape_cast %6 : vector<64x128xf32> to vector<8x8x128xf32>
    %c0_6 = arith.constant 0 : index
    %c0_7 = arith.constant 0 : index
    %8 = vector.load %arg3[%c0_6, %c0_7] : memref<32x128xf32, #tpu.memory_space<vmem>>, vector<32x128xf32>
    %cst_8 = arith.constant 0.000000e+00 : f32
    %9 = vector.broadcast %cst_8 : f32 to vector<8x32xf32>
    %cst_9 = arith.constant 0.000000e+00 : f32
    %10 = vector.broadcast %cst_9 : f32 to vector<8x32xf32>
    %11 = vector.extract_strided_slice %7 {offsets = [0, 0, 0], sizes = [1, 8, 128], strides = [1, 1, 1]} : vector<8x8x128xf32> to vector<1x8x128xf32>
    %12 = vector.shape_cast %11 : vector<1x8x128xf32> to vector<8x128xf32>
    %cst_10 = arith.constant dense<0.000000e+00> : vector<8x128xf32>
    %13 = tpu.matmul %9, %8, %cst_10 {dimension_numbers = #tpu.dot_dimension_numbers<[1], [0], [0], [1], [0, 0, 1, 1], [], []>} : vector<8x32xf32>, vector<32x128xf32>, vector<8x128xf32> -> vector<8x128xf32>
    %14 = arith.addf %12, %13 : vector<8x128xf32>
    %15 = arith.negf %14 : vector<8x128xf32>
    %16 = math.exp %15 : vector<8x128xf32>
    %cst_11 = arith.constant 1.000000e+00 : f32
    %17 = vector.broadcast %cst_11 : f32 to vector<8x128xf32>
    %18 = arith.addf %17, %16 : vector<8x128xf32>
    %19 = arith.divf %17, %18 : vector<8x128xf32>
    %20 = math.tanh %14 : vector<8x128xf32>
    %21 = vector.extract_strided_slice %19 {offsets = [0, 0], sizes = [8, 32], strides = [1, 1]} : vector<8x128xf32> to vector<8x32xf32>
    %22 = vector.extract_strided_slice %19 {offsets = [0, 32], sizes = [8, 32], strides = [1, 1]} : vector<8x128xf32> to vector<8x32xf32>
    %23 = vector.extract_strided_slice %20 {offsets = [0, 64], sizes = [8, 32], strides = [1, 1]} : vector<8x128xf32> to vector<8x32xf32>
    %24 = vector.extract_strided_slice %19 {offsets = [0, 96], sizes = [8, 32], strides = [1, 1]} : vector<8x128xf32> to vector<8x32xf32>
    %25 = arith.mulf %22, %10 : vector<8x32xf32>
    %26 = arith.mulf %21, %23 : vector<8x32xf32>
    %27 = arith.addf %25, %26 : vector<8x32xf32>
    %28 = math.tanh %27 : vector<8x32xf32>
    %29 = arith.mulf %24, %28 : vector<8x32xf32>
    %c0_12 = arith.constant 0 : index
    %c0_13 = arith.constant 0 : index
    %c0_14 = arith.constant 0 : index
    %30 = vector.load %arg11[%c0_12, %c0_13, %c0_14] : memref<8x8x32xf32, #tpu.memory_space<vmem>>, vector<1x8x32xf32>
    %31 = vector.shape_cast %30 : vector<1x8x32xf32> to vector<8x32xf32>
    %32 = vector.shape_cast %29 : vector<8x32xf32> to vector<1x8x32xf32>
    tpu.vector_store %arg11[%c0_12, %c0_13, %c0_14], %32 {strides = array<i32>} : memref<8x8x32xf32, #tpu.memory_space<vmem>>, vector<1x8x32xf32>,
    %33 = vector.extract_strided_slice %7 {offsets = [1, 0, 0], sizes = [1, 8, 128], strides = [1, 1, 1]} : vector<8x8x128xf32> to vector<1x8x128xf32>
    %34 = vector.shape_cast %33 : vector<1x8x128xf32> to vector<8x128xf32>
    %cst_15 = arith.constant dense<0.000000e+00> : vector<8x128xf32>
    %35 = tpu.matmul %29, %8, %cst_15 {dimension_numbers = #tpu.dot_dimension_numbers<[1], [0], [0], [1], [0, 0, 1, 1], [], []>} : vector<8x32xf32>, vector<32x128xf32>, vector<8x128xf32> -> vector<8x128xf32>
    %36 = arith.addf %34, %35 : vector<8x128xf32>
    %37 = arith.negf %36 : vector<8x128xf32>
    %38 = math.exp %37 : vector<8x128xf32>
    %cst_16 = arith.constant 1.000000e+00 : f32
    %39 = vector.broadcast %cst_16 : f32 to vector<8x128xf32>
    %40 = arith.addf %39, %38 : vector<8x128xf32>
    %41 = arith.divf %39, %40 : vector<8x128xf32>
    %42 = math.tanh %36 : vector<8x128xf32>
    %43 = vector.extract_strided_slice %41 {offsets = [0, 0], sizes = [8, 32], strides = [1, 1]} : vector<8x128xf32> to vector<8x32xf32>
    %44 = vector.extract_strided_slice %41 {offsets = [0, 32], sizes = [8, 32], strides = [1, 1]} : vector<8x128xf32> to vector<8x32xf32>
    %45 = vector.extract_strided_slice %42 {offsets = [0, 64], sizes = [8, 32], strides = [1, 1]} : vector<8x128xf32> to vector<8x32xf32>
    %46 = vector.extract_strided_slice %41 {offsets = [0, 96], sizes = [8, 32], strides = [1, 1]} : vector<8x128xf32> to vector<8x32xf32>
    %47 = arith.mulf %44, %27 : vector<8x32xf32>
    %48 = arith.mulf %43, %45 : vector<8x32xf32>
    %49 = arith.addf %47, %48 : vector<8x32xf32>
    %50 = math.tanh %49 : vector<8x32xf32>
    %51 = arith.mulf %46, %50 : vector<8x32xf32>
    %c1 = arith.constant 1 : index
    %c0_17 = arith.constant 0 : index
    %c0_18 = arith.constant 0 : index
    %52 = vector.load %arg11[%c1, %c0_17, %c0_18] : memref<8x8x32xf32, #tpu.memory_space<vmem>>, vector<1x8x32xf32>
    %53 = vector.shape_cast %52 : vector<1x8x32xf32> to vector<8x32xf32>
    %54 = vector.shape_cast %51 : vector<8x32xf32> to vector<1x8x32xf32>
    tpu.vector_store %arg11[%c1, %c0_17, %c0_18], %54 {strides = array<i32>} : memref<8x8x32xf32, #tpu.memory_space<vmem>>, vector<1x8x32xf32>,
    %55 = vector.extract_strided_slice %7 {offsets = [2, 0, 0], sizes = [1, 8, 128], strides = [1, 1, 1]} : vector<8x8x128xf32> to vector<1x8x128xf32>
    %56 = vector.shape_cast %55 : vector<1x8x128xf32> to vector<8x128xf32>
    %cst_19 = arith.constant dense<0.000000e+00> : vector<8x128xf32>
    %57 = tpu.matmul %51, %8, %cst_19 {dimension_numbers = #tpu.dot_dimension_numbers<[1], [0], [0], [1], [0, 0, 1, 1], [], []>} : vector<8x32xf32>, vector<32x128xf32>, vector<8x128xf32> -> vector<8x128xf32>
    %58 = arith.addf %56, %57 : vector<8x128xf32>
    %59 = arith.negf %58 : vector<8x128xf32>
    %60 = math.exp %59 : vector<8x128xf32>
    %cst_20 = arith.constant 1.000000e+00 : f32
    %61 = vector.broadcast %cst_20 : f32 to vector<8x128xf32>
    %62 = arith.addf %61, %60 : vector<8x128xf32>
    %63 = arith.divf %61, %62 : vector<8x128xf32>
    %64 = math.tanh %58 : vector<8x128xf32>
    %65 = vector.extract_strided_slice %63 {offsets = [0, 0], sizes = [8, 32], strides = [1, 1]} : vector<8x128xf32> to vector<8x32xf32>
    %66 = vector.extract_strided_slice %63 {offsets = [0, 32], sizes = [8, 32], strides = [1, 1]} : vector<8x128xf32> to vector<8x32xf32>
    %67 = vector.extract_strided_slice %64 {offsets = [0, 64], sizes = [8, 32], strides = [1, 1]} : vector<8x128xf32> to vector<8x32xf32>
    %68 = vector.extract_strided_slice %63 {offsets = [0, 96], sizes = [8, 32], strides = [1, 1]} : vector<8x128xf32> to vector<8x32xf32>
    %69 = arith.mulf %66, %49 : vector<8x32xf32>
    %70 = arith.mulf %65, %67 : vector<8x32xf32>
    %71 = arith.addf %69, %70 : vector<8x32xf32>
    %72 = math.tanh %71 : vector<8x32xf32>
    %73 = arith.mulf %68, %72 : vector<8x32xf32>
    %c2 = arith.constant 2 : index
    %c0_21 = arith.constant 0 : index
    %c0_22 = arith.constant 0 : index
    %74 = vector.load %arg11[%c2, %c0_21, %c0_22] : memref<8x8x32xf32, #tpu.memory_space<vmem>>, vector<1x8x32xf32>
    %75 = vector.shape_cast %74 : vector<1x8x32xf32> to vector<8x32xf32>
    %76 = vector.shape_cast %73 : vector<8x32xf32> to vector<1x8x32xf32>
    tpu.vector_store %arg11[%c2, %c0_21, %c0_22], %76 {strides = array<i32>} : memref<8x8x32xf32, #tpu.memory_space<vmem>>, vector<1x8x32xf32>,
    %77 = vector.extract_strided_slice %7 {offsets = [3, 0, 0], sizes = [1, 8, 128], strides = [1, 1, 1]} : vector<8x8x128xf32> to vector<1x8x128xf32>
    %78 = vector.shape_cast %77 : vector<1x8x128xf32> to vector<8x128xf32>
    %cst_23 = arith.constant dense<0.000000e+00> : vector<8x128xf32>
    %79 = tpu.matmul %73, %8, %cst_23 {dimension_numbers = #tpu.dot_dimension_numbers<[1], [0], [0], [1], [0, 0, 1, 1], [], []>} : vector<8x32xf32>, vector<32x128xf32>, vector<8x128xf32> -> vector<8x128xf32>
    %80 = arith.addf %78, %79 : vector<8x128xf32>
    %81 = arith.negf %80 : vector<8x128xf32>
    %82 = math.exp %81 : vector<8x128xf32>
    %cst_24 = arith.constant 1.000000e+00 : f32
    %83 = vector.broadcast %cst_24 : f32 to vector<8x128xf32>
    %84 = arith.addf %83, %82 : vector<8x128xf32>
    %85 = arith.divf %83, %84 : vector<8x128xf32>
    %86 = math.tanh %80 : vector<8x128xf32>
    %87 = vector.extract_strided_slice %85 {offsets = [0, 0], sizes = [8, 32], strides = [1, 1]} : vector<8x128xf32> to vector<8x32xf32>
    %88 = vector.extract_strided_slice %85 {offsets = [0, 32], sizes = [8, 32], strides = [1, 1]} : vector<8x128xf32> to vector<8x32xf32>
    %89 = vector.extract_strided_slice %86 {offsets = [0, 64], sizes = [8, 32], strides = [1, 1]} : vector<8x128xf32> to vector<8x32xf32>
    %90 = vector.extract_strided_slice %85 {offsets = [0, 96], sizes = [8, 32], strides = [1, 1]} : vector<8x128xf32> to vector<8x32xf32>
    %91 = arith.mulf %88, %71 : vector<8x32xf32>
    %92 = arith.mulf %87, %89 : vector<8x32xf32>
    %93 = arith.addf %91, %92 : vector<8x32xf32>
    %94 = math.tanh %93 : vector<8x32xf32>
    %95 = arith.mulf %90, %94 : vector<8x32xf32>
    %c3 = arith.constant 3 : index
    %c0_25 = arith.constant 0 : index
    %c0_26 = arith.constant 0 : index
    %96 = vector.load %arg11[%c3, %c0_25, %c0_26] : memref<8x8x32xf32, #tpu.memory_space<vmem>>, vector<1x8x32xf32>
    %97 = vector.shape_cast %96 : vector<1x8x32xf32> to vector<8x32xf32>
    %98 = vector.shape_cast %95 : vector<8x32xf32> to vector<1x8x32xf32>
    tpu.vector_store %arg11[%c3, %c0_25, %c0_26], %98 {strides = array<i32>} : memref<8x8x32xf32, #tpu.memory_space<vmem>>, vector<1x8x32xf32>,
    %99 = vector.extract_strided_slice %7 {offsets = [4, 0, 0], sizes = [1, 8, 128], strides = [1, 1, 1]} : vector<8x8x128xf32> to vector<1x8x128xf32>
    %100 = vector.shape_cast %99 : vector<1x8x128xf32> to vector<8x128xf32>
    %cst_27 = arith.constant dense<0.000000e+00> : vector<8x128xf32>
    %101 = tpu.matmul %95, %8, %cst_27 {dimension_numbers = #tpu.dot_dimension_numbers<[1], [0], [0], [1], [0, 0, 1, 1], [], []>} : vector<8x32xf32>, vector<32x128xf32>, vector<8x128xf32> -> vector<8x128xf32>
    %102 = arith.addf %100, %101 : vector<8x128xf32>
    %103 = arith.negf %102 : vector<8x128xf32>
    %104 = math.exp %103 : vector<8x128xf32>
    %cst_28 = arith.constant 1.000000e+00 : f32
    %105 = vector.broadcast %cst_28 : f32 to vector<8x128xf32>
    %106 = arith.addf %105, %104 : vector<8x128xf32>
    %107 = arith.divf %105, %106 : vector<8x128xf32>
    %108 = math.tanh %102 : vector<8x128xf32>
    %109 = vector.extract_strided_slice %107 {offsets = [0, 0], sizes = [8, 32], strides = [1, 1]} : vector<8x128xf32> to vector<8x32xf32>
    %110 = vector.extract_strided_slice %107 {offsets = [0, 32], sizes = [8, 32], strides = [1, 1]} : vector<8x128xf32> to vector<8x32xf32>
    %111 = vector.extract_strided_slice %108 {offsets = [0, 64], sizes = [8, 32], strides = [1, 1]} : vector<8x128xf32> to vector<8x32xf32>
    %112 = vector.extract_strided_slice %107 {offsets = [0, 96], sizes = [8, 32], strides = [1, 1]} : vector<8x128xf32> to vector<8x32xf32>
    %113 = arith.mulf %110, %93 : vector<8x32xf32>
    %114 = arith.mulf %109, %111 : vector<8x32xf32>
    %115 = arith.addf %113, %114 : vector<8x32xf32>
    %116 = math.tanh %115 : vector<8x32xf32>
    %117 = arith.mulf %112, %116 : vector<8x32xf32>
    %c4 = arith.constant 4 : index
    %c0_29 = arith.constant 0 : index
    %c0_30 = arith.constant 0 : index
    %118 = vector.load %arg11[%c4, %c0_29, %c0_30] : memref<8x8x32xf32, #tpu.memory_space<vmem>>, vector<1x8x32xf32>
    %119 = vector.shape_cast %118 : vector<1x8x32xf32> to vector<8x32xf32>
    %120 = vector.shape_cast %117 : vector<8x32xf32> to vector<1x8x32xf32>
    tpu.vector_store %arg11[%c4, %c0_29, %c0_30], %120 {strides = array<i32>} : memref<8x8x32xf32, #tpu.memory_space<vmem>>, vector<1x8x32xf32>,
    %121 = vector.extract_strided_slice %7 {offsets = [5, 0, 0], sizes = [1, 8, 128], strides = [1, 1, 1]} : vector<8x8x128xf32> to vector<1x8x128xf32>
    %122 = vector.shape_cast %121 : vector<1x8x128xf32> to vector<8x128xf32>
    %cst_31 = arith.constant dense<0.000000e+00> : vector<8x128xf32>
    %123 = tpu.matmul %117, %8, %cst_31 {dimension_numbers = #tpu.dot_dimension_numbers<[1], [0], [0], [1], [0, 0, 1, 1], [], []>} : vector<8x32xf32>, vector<32x128xf32>, vector<8x128xf32> -> vector<8x128xf32>
    %124 = arith.addf %122, %123 : vector<8x128xf32>
    %125 = arith.negf %124 : vector<8x128xf32>
    %126 = math.exp %125 : vector<8x128xf32>
    %cst_32 = arith.constant 1.000000e+00 : f32
    %127 = vector.broadcast %cst_32 : f32 to vector<8x128xf32>
    %128 = arith.addf %127, %126 : vector<8x128xf32>
    %129 = arith.divf %127, %128 : vector<8x128xf32>
    %130 = math.tanh %124 : vector<8x128xf32>
    %131 = vector.extract_strided_slice %129 {offsets = [0, 0], sizes = [8, 32], strides = [1, 1]} : vector<8x128xf32> to vector<8x32xf32>
    %132 = vector.extract_strided_slice %129 {offsets = [0, 32], sizes = [8, 32], strides = [1, 1]} : vector<8x128xf32> to vector<8x32xf32>
    %133 = vector.extract_strided_slice %130 {offsets = [0, 64], sizes = [8, 32], strides = [1, 1]} : vector<8x128xf32> to vector<8x32xf32>
    %134 = vector.extract_strided_slice %129 {offsets = [0, 96], sizes = [8, 32], strides = [1, 1]} : vector<8x128xf32> to vector<8x32xf32>
    %135 = arith.mulf %132, %115 : vector<8x32xf32>
    %136 = arith.mulf %131, %133 : vector<8x32xf32>
    %137 = arith.addf %135, %136 : vector<8x32xf32>
    %138 = math.tanh %137 : vector<8x32xf32>
    %139 = arith.mulf %134, %138 : vector<8x32xf32>
    %c5 = arith.constant 5 : index
    %c0_33 = arith.constant 0 : index
    %c0_34 = arith.constant 0 : index
    %140 = vector.load %arg11[%c5, %c0_33, %c0_34] : memref<8x8x32xf32, #tpu.memory_space<vmem>>, vector<1x8x32xf32>
    %141 = vector.shape_cast %140 : vector<1x8x32xf32> to vector<8x32xf32>
    %142 = vector.shape_cast %139 : vector<8x32xf32> to vector<1x8x32xf32>
    tpu.vector_store %arg11[%c5, %c0_33, %c0_34], %142 {strides = array<i32>} : memref<8x8x32xf32, #tpu.memory_space<vmem>>, vector<1x8x32xf32>,
    %143 = vector.extract_strided_slice %7 {offsets = [6, 0, 0], sizes = [1, 8, 128], strides = [1, 1, 1]} : vector<8x8x128xf32> to vector<1x8x128xf32>
    %144 = vector.shape_cast %143 : vector<1x8x128xf32> to vector<8x128xf32>
    %cst_35 = arith.constant dense<0.000000e+00> : vector<8x128xf32>
    %145 = tpu.matmul %139, %8, %cst_35 {dimension_numbers = #tpu.dot_dimension_numbers<[1], [0], [0], [1], [0, 0, 1, 1], [], []>} : vector<8x32xf32>, vector<32x128xf32>, vector<8x128xf32> -> vector<8x128xf32>
    %146 = arith.addf %144, %145 : vector<8x128xf32>
    %147 = arith.negf %146 : vector<8x128xf32>
    %148 = math.exp %147 : vector<8x128xf32>
    %cst_36 = arith.constant 1.000000e+00 : f32
    %149 = vector.broadcast %cst_36 : f32 to vector<8x128xf32>
    %150 = arith.addf %149, %148 : vector<8x128xf32>
    %151 = arith.divf %149, %150 : vector<8x128xf32>
    %152 = math.tanh %146 : vector<8x128xf32>
    %153 = vector.extract_strided_slice %151 {offsets = [0, 0], sizes = [8, 32], strides = [1, 1]} : vector<8x128xf32> to vector<8x32xf32>
    %154 = vector.extract_strided_slice %151 {offsets = [0, 32], sizes = [8, 32], strides = [1, 1]} : vector<8x128xf32> to vector<8x32xf32>
    %155 = vector.extract_strided_slice %152 {offsets = [0, 64], sizes = [8, 32], strides = [1, 1]} : vector<8x128xf32> to vector<8x32xf32>
    %156 = vector.extract_strided_slice %151 {offsets = [0, 96], sizes = [8, 32], strides = [1, 1]} : vector<8x128xf32> to vector<8x32xf32>
    %157 = arith.mulf %154, %137 : vector<8x32xf32>
    %158 = arith.mulf %153, %155 : vector<8x32xf32>
    %159 = arith.addf %157, %158 : vector<8x32xf32>
    %160 = math.tanh %159 : vector<8x32xf32>
    %161 = arith.mulf %156, %160 : vector<8x32xf32>
    %c6 = arith.constant 6 : index
    %c0_37 = arith.constant 0 : index
    %c0_38 = arith.constant 0 : index
    %162 = vector.load %arg11[%c6, %c0_37, %c0_38] : memref<8x8x32xf32, #tpu.memory_space<vmem>>, vector<1x8x32xf32>
    %163 = vector.shape_cast %162 : vector<1x8x32xf32> to vector<8x32xf32>
    %164 = vector.shape_cast %161 : vector<8x32xf32> to vector<1x8x32xf32>
    tpu.vector_store %arg11[%c6, %c0_37, %c0_38], %164 {strides = array<i32>} : memref<8x8x32xf32, #tpu.memory_space<vmem>>, vector<1x8x32xf32>,
    %165 = vector.extract_strided_slice %7 {offsets = [7, 0, 0], sizes = [1, 8, 128], strides = [1, 1, 1]} : vector<8x8x128xf32> to vector<1x8x128xf32>
    %166 = vector.shape_cast %165 : vector<1x8x128xf32> to vector<8x128xf32>
    %cst_39 = arith.constant dense<0.000000e+00> : vector<8x128xf32>
    %167 = tpu.matmul %161, %8, %cst_39 {dimension_numbers = #tpu.dot_dimension_numbers<[1], [0], [0], [1], [0, 0, 1, 1], [], []>} : vector<8x32xf32>, vector<32x128xf32>, vector<8x128xf32> -> vector<8x128xf32>
    %168 = arith.addf %166, %167 : vector<8x128xf32>
    %169 = arith.negf %168 : vector<8x128xf32>
    %170 = math.exp %169 : vector<8x128xf32>
    %cst_40 = arith.constant 1.000000e+00 : f32
    %171 = vector.broadcast %cst_40 : f32 to vector<8x128xf32>
    %172 = arith.addf %171, %170 : vector<8x128xf32>
    %173 = arith.divf %171, %172 : vector<8x128xf32>
    %174 = math.tanh %168 : vector<8x128xf32>
    %175 = vector.extract_strided_slice %173 {offsets = [0, 0], sizes = [8, 32], strides = [1, 1]} : vector<8x128xf32> to vector<8x32xf32>
    %176 = vector.extract_strided_slice %173 {offsets = [0, 32], sizes = [8, 32], strides = [1, 1]} : vector<8x128xf32> to vector<8x32xf32>
    %177 = vector.extract_strided_slice %174 {offsets = [0, 64], sizes = [8, 32], strides = [1, 1]} : vector<8x128xf32> to vector<8x32xf32>
    %178 = vector.extract_strided_slice %173 {offsets = [0, 96], sizes = [8, 32], strides = [1, 1]} : vector<8x128xf32> to vector<8x32xf32>
    %179 = arith.mulf %176, %159 : vector<8x32xf32>
    %180 = arith.mulf %175, %177 : vector<8x32xf32>
    %181 = arith.addf %179, %180 : vector<8x32xf32>
    %182 = math.tanh %181 : vector<8x32xf32>
    %183 = arith.mulf %178, %182 : vector<8x32xf32>
    %c7 = arith.constant 7 : index
    %c0_41 = arith.constant 0 : index
    %c0_42 = arith.constant 0 : index
    %184 = vector.load %arg11[%c7, %c0_41, %c0_42] : memref<8x8x32xf32, #tpu.memory_space<vmem>>, vector<1x8x32xf32>
    %185 = vector.shape_cast %184 : vector<1x8x32xf32> to vector<8x32xf32>
    %186 = vector.shape_cast %183 : vector<8x32xf32> to vector<1x8x32xf32>
    tpu.vector_store %arg11[%c7, %c0_41, %c0_42], %186 {strides = array<i32>} : memref<8x8x32xf32, #tpu.memory_space<vmem>>, vector<1x8x32xf32>,
    %c0_43 = arith.constant 0 : index
    %c0_44 = arith.constant 0 : index
    %c0_45 = arith.constant 0 : index
    %187 = vector.load %arg11[%c0_43, %c0_44, %c0_45] : memref<8x8x32xf32, #tpu.memory_space<vmem>>, vector<8x8x32xf32>
    %188 = vector.shape_cast %187 : vector<8x8x32xf32> to vector<64x32xf32>
    %c0_46 = arith.constant 0 : index
    %c0_47 = arith.constant 0 : index
    %189 = vector.load %arg5[%c0_46, %c0_47] : memref<32x128xf32, #tpu.memory_space<vmem>>, vector<32x128xf32>
    %cst_48 = arith.constant dense<0.000000e+00> : vector<64x128xf32>
    %190 = tpu.matmul %188, %189, %cst_48 {dimension_numbers = #tpu.dot_dimension_numbers<[1], [0], [0], [1], [0, 0, 1, 1], [], []>} : vector<64x32xf32>, vector<32x128xf32>, vector<64x128xf32> -> vector<64x128xf32>
    %c0_49 = arith.constant 0 : index
    %c0_50 = arith.constant 0 : index
    %191 = vector.load %arg7[%c0_49, %c0_50] : memref<1x128xf32, #tpu.memory_space<vmem>>, vector<1x128xf32>
    %192 = vector.broadcast %191 : vector<1x128xf32> to vector<64x128xf32>
    %193 = arith.addf %190, %192 : vector<64x128xf32>
    %194 = vector.shape_cast %193 : vector<64x128xf32> to vector<8x8x128xf32>
    %c0_51 = arith.constant 0 : index
    %c0_52 = arith.constant 0 : index
    %195 = vector.load %arg6[%c0_51, %c0_52] : memref<32x128xf32, #tpu.memory_space<vmem>>, vector<32x128xf32>
    %cst_53 = arith.constant 0.000000e+00 : f32
    %196 = vector.broadcast %cst_53 : f32 to vector<8x32xf32>
    %cst_54 = arith.constant 0.000000e+00 : f32
    %197 = vector.broadcast %cst_54 : f32 to vector<8x32xf32>
    %198 = vector.extract_strided_slice %194 {offsets = [0, 0, 0], sizes = [1, 8, 128], strides = [1, 1, 1]} : vector<8x8x128xf32> to vector<1x8x128xf32>
    %199 = vector.shape_cast %198 : vector<1x8x128xf32> to vector<8x128xf32>
    %cst_55 = arith.constant dense<0.000000e+00> : vector<8x128xf32>
    %200 = tpu.matmul %196, %195, %cst_55 {dimension_numbers = #tpu.dot_dimension_numbers<[1], [0], [0], [1], [0, 0, 1, 1], [], []>} : vector<8x32xf32>, vector<32x128xf32>, vector<8x128xf32> -> vector<8x128xf32>
    %201 = arith.addf %199, %200 : vector<8x128xf32>
    %202 = arith.negf %201 : vector<8x128xf32>
    %203 = math.exp %202 : vector<8x128xf32>
    %cst_56 = arith.constant 1.000000e+00 : f32
    %204 = vector.broadcast %cst_56 : f32 to vector<8x128xf32>
    %205 = arith.addf %204, %203 : vector<8x128xf32>
    %206 = arith.divf %204, %205 : vector<8x128xf32>
    %207 = math.tanh %201 : vector<8x128xf32>
    %208 = vector.extract_strided_slice %206 {offsets = [0, 0], sizes = [8, 32], strides = [1, 1]} : vector<8x128xf32> to vector<8x32xf32>
    %209 = vector.extract_strided_slice %206 {offsets = [0, 32], sizes = [8, 32], strides = [1, 1]} : vector<8x128xf32> to vector<8x32xf32>
    %210 = vector.extract_strided_slice %207 {offsets = [0, 64], sizes = [8, 32], strides = [1, 1]} : vector<8x128xf32> to vector<8x32xf32>
    %211 = vector.extract_strided_slice %206 {offsets = [0, 96], sizes = [8, 32], strides = [1, 1]} : vector<8x128xf32> to vector<8x32xf32>
    %212 = arith.mulf %209, %197 : vector<8x32xf32>
    %213 = arith.mulf %208, %210 : vector<8x32xf32>
    %214 = arith.addf %212, %213 : vector<8x32xf32>
    %215 = math.tanh %214 : vector<8x32xf32>
    %216 = arith.mulf %211, %215 : vector<8x32xf32>
    %217 = vector.extract_strided_slice %194 {offsets = [1, 0, 0], sizes = [1, 8, 128], strides = [1, 1, 1]} : vector<8x8x128xf32> to vector<1x8x128xf32>
    %218 = vector.shape_cast %217 : vector<1x8x128xf32> to vector<8x128xf32>
    %cst_57 = arith.constant dense<0.000000e+00> : vector<8x128xf32>
    %219 = tpu.matmul %216, %195, %cst_57 {dimension_numbers = #tpu.dot_dimension_numbers<[1], [0], [0], [1], [0, 0, 1, 1], [], []>} : vector<8x32xf32>, vector<32x128xf32>, vector<8x128xf32> -> vector<8x128xf32>
    %220 = arith.addf %218, %219 : vector<8x128xf32>
    %221 = arith.negf %220 : vector<8x128xf32>
    %222 = math.exp %221 : vector<8x128xf32>
    %cst_58 = arith.constant 1.000000e+00 : f32
    %223 = vector.broadcast %cst_58 : f32 to vector<8x128xf32>
    %224 = arith.addf %223, %222 : vector<8x128xf32>
    %225 = arith.divf %223, %224 : vector<8x128xf32>
    %226 = math.tanh %220 : vector<8x128xf32>
    %227 = vector.extract_strided_slice %225 {offsets = [0, 0], sizes = [8, 32], strides = [1, 1]} : vector<8x128xf32> to vector<8x32xf32>
    %228 = vector.extract_strided_slice %225 {offsets = [0, 32], sizes = [8, 32], strides = [1, 1]} : vector<8x128xf32> to vector<8x32xf32>
    %229 = vector.extract_strided_slice %226 {offsets = [0, 64], sizes = [8, 32], strides = [1, 1]} : vector<8x128xf32> to vector<8x32xf32>
    %230 = vector.extract_strided_slice %225 {offsets = [0, 96], sizes = [8, 32], strides = [1, 1]} : vector<8x128xf32> to vector<8x32xf32>
    %231 = arith.mulf %228, %214 : vector<8x32xf32>
    %232 = arith.mulf %227, %229 : vector<8x32xf32>
    %233 = arith.addf %231, %232 : vector<8x32xf32>
    %234 = math.tanh %233 : vector<8x32xf32>
    %235 = arith.mulf %230, %234 : vector<8x32xf32>
    %236 = vector.extract_strided_slice %194 {offsets = [2, 0, 0], sizes = [1, 8, 128], strides = [1, 1, 1]} : vector<8x8x128xf32> to vector<1x8x128xf32>
    %237 = vector.shape_cast %236 : vector<1x8x128xf32> to vector<8x128xf32>
    %cst_59 = arith.constant dense<0.000000e+00> : vector<8x128xf32>
    %238 = tpu.matmul %235, %195, %cst_59 {dimension_numbers = #tpu.dot_dimension_numbers<[1], [0], [0], [1], [0, 0, 1, 1], [], []>} : vector<8x32xf32>, vector<32x128xf32>, vector<8x128xf32> -> vector<8x128xf32>
    %239 = arith.addf %237, %238 : vector<8x128xf32>
    %240 = arith.negf %239 : vector<8x128xf32>
    %241 = math.exp %240 : vector<8x128xf32>
    %cst_60 = arith.constant 1.000000e+00 : f32
    %242 = vector.broadcast %cst_60 : f32 to vector<8x128xf32>
    %243 = arith.addf %242, %241 : vector<8x128xf32>
    %244 = arith.divf %242, %243 : vector<8x128xf32>
    %245 = math.tanh %239 : vector<8x128xf32>
    %246 = vector.extract_strided_slice %244 {offsets = [0, 0], sizes = [8, 32], strides = [1, 1]} : vector<8x128xf32> to vector<8x32xf32>
    %247 = vector.extract_strided_slice %244 {offsets = [0, 32], sizes = [8, 32], strides = [1, 1]} : vector<8x128xf32> to vector<8x32xf32>
    %248 = vector.extract_strided_slice %245 {offsets = [0, 64], sizes = [8, 32], strides = [1, 1]} : vector<8x128xf32> to vector<8x32xf32>
    %249 = vector.extract_strided_slice %244 {offsets = [0, 96], sizes = [8, 32], strides = [1, 1]} : vector<8x128xf32> to vector<8x32xf32>
    %250 = arith.mulf %247, %233 : vector<8x32xf32>
    %251 = arith.mulf %246, %248 : vector<8x32xf32>
    %252 = arith.addf %250, %251 : vector<8x32xf32>
    %253 = math.tanh %252 : vector<8x32xf32>
    %254 = arith.mulf %249, %253 : vector<8x32xf32>
    %255 = vector.extract_strided_slice %194 {offsets = [3, 0, 0], sizes = [1, 8, 128], strides = [1, 1, 1]} : vector<8x8x128xf32> to vector<1x8x128xf32>
    %256 = vector.shape_cast %255 : vector<1x8x128xf32> to vector<8x128xf32>
    %cst_61 = arith.constant dense<0.000000e+00> : vector<8x128xf32>
    %257 = tpu.matmul %254, %195, %cst_61 {dimension_numbers = #tpu.dot_dimension_numbers<[1], [0], [0], [1], [0, 0, 1, 1], [], []>} : vector<8x32xf32>, vector<32x128xf32>, vector<8x128xf32> -> vector<8x128xf32>
    %258 = arith.addf %256, %257 : vector<8x128xf32>
    %259 = arith.negf %258 : vector<8x128xf32>
    %260 = math.exp %259 : vector<8x128xf32>
    %cst_62 = arith.constant 1.000000e+00 : f32
    %261 = vector.broadcast %cst_62 : f32 to vector<8x128xf32>
    %262 = arith.addf %261, %260 : vector<8x128xf32>
    %263 = arith.divf %261, %262 : vector<8x128xf32>
    %264 = math.tanh %258 : vector<8x128xf32>
    %265 = vector.extract_strided_slice %263 {offsets = [0, 0], sizes = [8, 32], strides = [1, 1]} : vector<8x128xf32> to vector<8x32xf32>
    %266 = vector.extract_strided_slice %263 {offsets = [0, 32], sizes = [8, 32], strides = [1, 1]} : vector<8x128xf32> to vector<8x32xf32>
    %267 = vector.extract_strided_slice %264 {offsets = [0, 64], sizes = [8, 32], strides = [1, 1]} : vector<8x128xf32> to vector<8x32xf32>
    %268 = vector.extract_strided_slice %263 {offsets = [0, 96], sizes = [8, 32], strides = [1, 1]} : vector<8x128xf32> to vector<8x32xf32>
    %269 = arith.mulf %266, %252 : vector<8x32xf32>
    %270 = arith.mulf %265, %267 : vector<8x32xf32>
    %271 = arith.addf %269, %270 : vector<8x32xf32>
    %272 = math.tanh %271 : vector<8x32xf32>
    %273 = arith.mulf %268, %272 : vector<8x32xf32>
    %274 = vector.extract_strided_slice %194 {offsets = [4, 0, 0], sizes = [1, 8, 128], strides = [1, 1, 1]} : vector<8x8x128xf32> to vector<1x8x128xf32>
    %275 = vector.shape_cast %274 : vector<1x8x128xf32> to vector<8x128xf32>
    %cst_63 = arith.constant dense<0.000000e+00> : vector<8x128xf32>
    %276 = tpu.matmul %273, %195, %cst_63 {dimension_numbers = #tpu.dot_dimension_numbers<[1], [0], [0], [1], [0, 0, 1, 1], [], []>} : vector<8x32xf32>, vector<32x128xf32>, vector<8x128xf32> -> vector<8x128xf32>
    %277 = arith.addf %275, %276 : vector<8x128xf32>
    %278 = arith.negf %277 : vector<8x128xf32>
    %279 = math.exp %278 : vector<8x128xf32>
    %cst_64 = arith.constant 1.000000e+00 : f32
    %280 = vector.broadcast %cst_64 : f32 to vector<8x128xf32>
    %281 = arith.addf %280, %279 : vector<8x128xf32>
    %282 = arith.divf %280, %281 : vector<8x128xf32>
    %283 = math.tanh %277 : vector<8x128xf32>
    %284 = vector.extract_strided_slice %282 {offsets = [0, 0], sizes = [8, 32], strides = [1, 1]} : vector<8x128xf32> to vector<8x32xf32>
    %285 = vector.extract_strided_slice %282 {offsets = [0, 32], sizes = [8, 32], strides = [1, 1]} : vector<8x128xf32> to vector<8x32xf32>
    %286 = vector.extract_strided_slice %283 {offsets = [0, 64], sizes = [8, 32], strides = [1, 1]} : vector<8x128xf32> to vector<8x32xf32>
    %287 = vector.extract_strided_slice %282 {offsets = [0, 96], sizes = [8, 32], strides = [1, 1]} : vector<8x128xf32> to vector<8x32xf32>
    %288 = arith.mulf %285, %271 : vector<8x32xf32>
    %289 = arith.mulf %284, %286 : vector<8x32xf32>
    %290 = arith.addf %288, %289 : vector<8x32xf32>
    %291 = math.tanh %290 : vector<8x32xf32>
    %292 = arith.mulf %287, %291 : vector<8x32xf32>
    %293 = vector.extract_strided_slice %194 {offsets = [5, 0, 0], sizes = [1, 8, 128], strides = [1, 1, 1]} : vector<8x8x128xf32> to vector<1x8x128xf32>
    %294 = vector.shape_cast %293 : vector<1x8x128xf32> to vector<8x128xf32>
    %cst_65 = arith.constant dense<0.000000e+00> : vector<8x128xf32>
    %295 = tpu.matmul %292, %195, %cst_65 {dimension_numbers = #tpu.dot_dimension_numbers<[1], [0], [0], [1], [0, 0, 1, 1], [], []>} : vector<8x32xf32>, vector<32x128xf32>, vector<8x128xf32> -> vector<8x128xf32>
    %296 = arith.addf %294, %295 : vector<8x128xf32>
    %297 = arith.negf %296 : vector<8x128xf32>
    %298 = math.exp %297 : vector<8x128xf32>
    %cst_66 = arith.constant 1.000000e+00 : f32
    %299 = vector.broadcast %cst_66 : f32 to vector<8x128xf32>
    %300 = arith.addf %299, %298 : vector<8x128xf32>
    %301 = arith.divf %299, %300 : vector<8x128xf32>
    %302 = math.tanh %296 : vector<8x128xf32>
    %303 = vector.extract_strided_slice %301 {offsets = [0, 0], sizes = [8, 32], strides = [1, 1]} : vector<8x128xf32> to vector<8x32xf32>
    %304 = vector.extract_strided_slice %301 {offsets = [0, 32], sizes = [8, 32], strides = [1, 1]} : vector<8x128xf32> to vector<8x32xf32>
    %305 = vector.extract_strided_slice %302 {offsets = [0, 64], sizes = [8, 32], strides = [1, 1]} : vector<8x128xf32> to vector<8x32xf32>
    %306 = vector.extract_strided_slice %301 {offsets = [0, 96], sizes = [8, 32], strides = [1, 1]} : vector<8x128xf32> to vector<8x32xf32>
    %307 = arith.mulf %304, %290 : vector<8x32xf32>
    %308 = arith.mulf %303, %305 : vector<8x32xf32>
    %309 = arith.addf %307, %308 : vector<8x32xf32>
    %310 = math.tanh %309 : vector<8x32xf32>
    %311 = arith.mulf %306, %310 : vector<8x32xf32>
    %312 = vector.extract_strided_slice %194 {offsets = [6, 0, 0], sizes = [1, 8, 128], strides = [1, 1, 1]} : vector<8x8x128xf32> to vector<1x8x128xf32>
    %313 = vector.shape_cast %312 : vector<1x8x128xf32> to vector<8x128xf32>
    %cst_67 = arith.constant dense<0.000000e+00> : vector<8x128xf32>
    %314 = tpu.matmul %311, %195, %cst_67 {dimension_numbers = #tpu.dot_dimension_numbers<[1], [0], [0], [1], [0, 0, 1, 1], [], []>} : vector<8x32xf32>, vector<32x128xf32>, vector<8x128xf32> -> vector<8x128xf32>
    %315 = arith.addf %313, %314 : vector<8x128xf32>
    %316 = arith.negf %315 : vector<8x128xf32>
    %317 = math.exp %316 : vector<8x128xf32>
    %cst_68 = arith.constant 1.000000e+00 : f32
    %318 = vector.broadcast %cst_68 : f32 to vector<8x128xf32>
    %319 = arith.addf %318, %317 : vector<8x128xf32>
    %320 = arith.divf %318, %319 : vector<8x128xf32>
    %321 = math.tanh %315 : vector<8x128xf32>
    %322 = vector.extract_strided_slice %320 {offsets = [0, 0], sizes = [8, 32], strides = [1, 1]} : vector<8x128xf32> to vector<8x32xf32>
    %323 = vector.extract_strided_slice %320 {offsets = [0, 32], sizes = [8, 32], strides = [1, 1]} : vector<8x128xf32> to vector<8x32xf32>
    %324 = vector.extract_strided_slice %321 {offsets = [0, 64], sizes = [8, 32], strides = [1, 1]} : vector<8x128xf32> to vector<8x32xf32>
    %325 = vector.extract_strided_slice %320 {offsets = [0, 96], sizes = [8, 32], strides = [1, 1]} : vector<8x128xf32> to vector<8x32xf32>
    %326 = arith.mulf %323, %309 : vector<8x32xf32>
    %327 = arith.mulf %322, %324 : vector<8x32xf32>
    %328 = arith.addf %326, %327 : vector<8x32xf32>
    %329 = math.tanh %328 : vector<8x32xf32>
    %330 = arith.mulf %325, %329 : vector<8x32xf32>
    %331 = vector.extract_strided_slice %194 {offsets = [7, 0, 0], sizes = [1, 8, 128], strides = [1, 1, 1]} : vector<8x8x128xf32> to vector<1x8x128xf32>
    %332 = vector.shape_cast %331 : vector<1x8x128xf32> to vector<8x128xf32>
    %cst_69 = arith.constant dense<0.000000e+00> : vector<8x128xf32>
    %333 = tpu.matmul %330, %195, %cst_69 {dimension_numbers = #tpu.dot_dimension_numbers<[1], [0], [0], [1], [0, 0, 1, 1], [], []>} : vector<8x32xf32>, vector<32x128xf32>, vector<8x128xf32> -> vector<8x128xf32>
    %334 = arith.addf %332, %333 : vector<8x128xf32>
    %335 = arith.negf %334 : vector<8x128xf32>
    %336 = math.exp %335 : vector<8x128xf32>
    %cst_70 = arith.constant 1.000000e+00 : f32
    %337 = vector.broadcast %cst_70 : f32 to vector<8x128xf32>
    %338 = arith.addf %337, %336 : vector<8x128xf32>
    %339 = arith.divf %337, %338 : vector<8x128xf32>
    %340 = math.tanh %334 : vector<8x128xf32>
    %341 = vector.extract_strided_slice %339 {offsets = [0, 0], sizes = [8, 32], strides = [1, 1]} : vector<8x128xf32> to vector<8x32xf32>
    %342 = vector.extract_strided_slice %339 {offsets = [0, 32], sizes = [8, 32], strides = [1, 1]} : vector<8x128xf32> to vector<8x32xf32>
    %343 = vector.extract_strided_slice %340 {offsets = [0, 64], sizes = [8, 32], strides = [1, 1]} : vector<8x128xf32> to vector<8x32xf32>
    %344 = vector.extract_strided_slice %339 {offsets = [0, 96], sizes = [8, 32], strides = [1, 1]} : vector<8x128xf32> to vector<8x32xf32>
    %345 = arith.mulf %342, %328 : vector<8x32xf32>
    %346 = arith.mulf %341, %343 : vector<8x32xf32>
    %347 = arith.addf %345, %346 : vector<8x32xf32>
    %348 = math.tanh %347 : vector<8x32xf32>
    %349 = arith.mulf %344, %348 : vector<8x32xf32>
    %c0_71 = arith.constant 0 : index
    %c0_72 = arith.constant 0 : index
    %350 = vector.load %arg8[%c0_71, %c0_72] : memref<32x4xf32, #tpu.memory_space<vmem>>, vector<32x4xf32>
    %cst_73 = arith.constant dense<0.000000e+00> : vector<8x4xf32>
    %351 = tpu.matmul %349, %350, %cst_73 {dimension_numbers = #tpu.dot_dimension_numbers<[1], [0], [0], [1], [0, 0, 1, 1], [], []>} : vector<8x32xf32>, vector<32x4xf32>, vector<8x4xf32> -> vector<8x4xf32>
    %c0_74 = arith.constant 0 : index
    %c0_75 = arith.constant 0 : index
    %352 = vector.load %arg9[%c0_74, %c0_75] : memref<1x4xf32, #tpu.memory_space<vmem>>, vector<1x4xf32>
    %353 = vector.broadcast %352 : vector<1x4xf32> to vector<8x4xf32>
    %354 = arith.addf %351, %353 : vector<8x4xf32>
    %c0_76 = arith.constant 0 : index
    %c0_77 = arith.constant 0 : index
    %355 = vector.load %arg10[%c0_76, %c0_77] : memref<8x4xf32, #tpu.memory_space<vmem>>, vector<8x4xf32>
    tpu.vector_store %arg10[%c0_76, %c0_77], %354 {strides = array<i32>} : memref<8x4xf32, #tpu.memory_space<vmem>>, vector<8x4xf32>,
    return
  }
  func.func @transform_0(%arg0: i32) -> (i32, i32, i32) {
    %c0_i32 = arith.constant 0 : i32
    %c0_i32_0 = arith.constant 0 : i32
    %c0_i32_1 = arith.constant 0 : i32
    %c0_i32_2 = arith.constant 0 : i32
    return %c0_i32, %c0_i32_0, %c0_i32_1 : i32, i32, i32
  }
  func.func @transform_1(%arg0: i32) -> (i32, i32) {
    %c0_i32 = arith.constant 0 : i32
    %c0_i32_0 = arith.constant 0 : i32
    %c0_i32_1 = arith.constant 0 : i32
    return %c0_i32, %c0_i32_0 : i32, i32
  }
  func.func @transform_2(%arg0: i32) -> (i32, i32) {
    %c0_i32 = arith.constant 0 : i32
    %c0_i32_0 = arith.constant 0 : i32
    %c0_i32_1 = arith.constant 0 : i32
    return %c0_i32, %c0_i32_0 : i32, i32
  }
  func.func @transform_3(%arg0: i32) -> (i32, i32) {
    %c0_i32 = arith.constant 0 : i32
    %c0_i32_0 = arith.constant 0 : i32
    %c0_i32_1 = arith.constant 0 : i32
    return %c0_i32, %c0_i32_0 : i32, i32
  }
  func.func @transform_4(%arg0: i32) -> (i32, i32) {
    %c0_i32 = arith.constant 0 : i32
    %c0_i32_0 = arith.constant 0 : i32
    %c0_i32_1 = arith.constant 0 : i32
    return %c0_i32, %c0_i32_0 : i32, i32
  }
  func.func @transform_5(%arg0: i32) -> (i32, i32) {
    %c0_i32 = arith.constant 0 : i32
    %c0_i32_0 = arith.constant 0 : i32
    %c0_i32_1 = arith.constant 0 : i32
    return %c0_i32, %c0_i32_0 : i32, i32
  }
  func.func @transform_6(%arg0: i32) -> (i32, i32) {
    %c0_i32 = arith.constant 0 : i32
    %c0_i32_0 = arith.constant 0 : i32
    %c0_i32_1 = arith.constant 0 : i32
    return %c0_i32, %c0_i32_0 : i32, i32
  }
  func.func @transform_7(%arg0: i32) -> (i32, i32) {
    %c0_i32 = arith.constant 0 : i32
    %c0_i32_0 = arith.constant 0 : i32
    %c0_i32_1 = arith.constant 0 : i32
    return %c0_i32, %c0_i32_0 : i32, i32
  }
  func.func @transform_8(%arg0: i32) -> (i32, i32) {
    %c0_i32 = arith.constant 0 : i32
    %c0_i32_0 = arith.constant 0 : i32
    %c0_i32_1 = arith.constant 0 : i32
    return %c0_i32, %c0_i32_0 : i32, i32
  }
  func.func @transform_9(%arg0: i32) -> (i32, i32) {
    %c0_i32 = arith.constant 0 : i32
    %c0_i32_0 = arith.constant 0 : i32
    %c0_i32_1 = arith.constant 0 : i32
    return %c0_i32, %c0_i32_0 : i32, i32
  }
}

</mosaic_0001>

<llo_original>
// kernel: tpu_custom_call.1
$region0: #{tpu_custom_call.1}
  #allocation0 [shape = 'u32[]', space=smem, size = 0x4, offset = 0x4, fixed_abs, tag = 'smem constant byte address 0x4 - core index']
  #allocation1 [shape = 'u32[72,128]{1,0:T(1,128)}', space=vmem, size = 0x9000, scoped, tag = 'internal scratch']
  #allocation2 [shape = 'f32[8,8,32]{2,1,0:T(8,128)}', space=vmem, size = 0x8000, scoped, tag = 'scratch operand']
  %s0 = inlined_call_operand.hbm [shape: f32[8,8,32], index: 0, kind: input, shape index: {}]
  %s1 = inlined_call_operand.vmem [shape: f32[32,128], index: 1, kind: input, shape index: {}]
  %s2 = inlined_call_operand.hbm [shape: f32[32,128], index: 2, kind: input, shape index: {}]
  %s3 = inlined_call_operand.vmem [shape: f32[1,128], index: 3, kind: input, shape index: {}]
  %s4 = inlined_call_operand.hbm [shape: f32[32,128], index: 4, kind: input, shape index: {}]
  %s5 = inlined_call_operand.hbm [shape: f32[32,128], index: 5, kind: input, shape index: {}]
  %s6 = inlined_call_operand.vmem [shape: f32[1,128], index: 6, kind: input, shape index: {}]
  %s7 = inlined_call_operand.vmem [shape: f32[32,4], index: 7, kind: input, shape index: {}]
  %s8 = inlined_call_operand.vmem [shape: f32[1,4], index: 8, kind: input, shape index: {}]
  %s9 = inlined_call_operand.vmem [shape: f32[8,4], index: 9, kind: output, shape index: {}]
  %s10 = sld [smem:[#allocation0]]
  $region62: #{tpu_custom_call.1} parent=0
    _
  %s12 = ssub.s32 1, %s10
  %s13 = scalar_select 0, %s12, %s10
  $region1: #{tpu_custom_call.1} parent=0
    #allocation3 [shape = 'u8[32768]{0}', space=vmem, size = 0x8000, scoped, tag = 'input window, operand 0, single buffered']
    #allocation4 [shape = 's32[1]{0}', space=sflag, size = 0x4, scoped, tag = 'scoped memory for tpu_custom_call.1']
    #allocation5 [shape = 'u8[16384]{0}', space=vmem, size = 0x4000, scoped, tag = 'input window, operand 2, single buffered']
    #allocation6 [shape = 's32[1]{0}', space=sflag, size = 0x4, scoped, tag = 'scoped memory for tpu_custom_call.1']
    #allocation7 [shape = 'u8[16384]{0}', space=vmem, size = 0x4000, scoped, tag = 'input window, operand 4, single buffered']
    #allocation8 [shape = 'u8[16384]{0}', space=vmem, size = 0x4000, scoped, tag = 'input window, operand 5, single buffered']
    #allocation9 [shape = 's32[1]{0}', space=sflag, size = 0x4, scoped, tag = 'scoped memory for tpu_custom_call.1']
    %14 = vsyncpa [#allocation4], 0
    %15 = vsyncpa [#allocation6], 0
    %16 = vsyncpa [#allocation9], 0
    // Predicated region
    $region2: #{tpu_custom_call.1} parent=1 // pred_check
      _
    $region3: #{tpu_custom_call.1} parent=1 // pred_check_branch
      %18 = sbr.rel (0) target = $region5
    $region4: #{tpu_custom_call.1} parent=1 // pred_region
      %20 = vsyncadd [#allocation4], 0
      %s21 = sshll.u32 %s0, 4
      %s22 = int_to_ptr.hbm [resolvable:$true] %s21
      %s23 = sshll.u32 [#allocation3], 4
      %s24 = int_to_ptr.vmem [resolvable:$true] %s23
      %29 = dma.hbm_to_vmem [thread:$0]  %s22, 1024, %s24, [#allocation4], 128, 128, 8
    $region5: #{tpu_custom_call.1} parent=1 // pred_fallthru
      _
    // Predicated region
    $region6: #{tpu_custom_call.1} parent=1 // pred_check
      _
    $region7: #{tpu_custom_call.1} parent=1 // pred_check_branch
      %31 = sbr.rel (0) target = $region9
    $region8: #{tpu_custom_call.1} parent=1 // pred_region
      _
    $region9: #{tpu_custom_call.1} parent=1 // pred_fallthru
      _
    // Predicated region
    $region10: #{tpu_custom_call.1} parent=1 // pred_check
      _
    $region11: #{tpu_custom_call.1} parent=1 // pred_check_branch
      %33 = sbr.rel (0) target = $region13
    $region12: #{tpu_custom_call.1} parent=1 // pred_region
      %35 = vsyncadd [#allocation6], 0
      %s36 = sshll.u32 %s2, 4
      %s37 = int_to_ptr.hbm [resolvable:$true] %s36
      %s38 = sshll.u32 [#allocation5], 4
      %s39 = int_to_ptr.vmem [resolvable:$true] %s38
      %44 = dma.hbm_to_vmem [thread:$0]  %s37, 512, %s39, [#allocation6], 128, 128, 8
    $region13: #{tpu_custom_call.1} parent=1 // pred_fallthru
      _
    // Predicated region
    $region14: #{tpu_custom_call.1} parent=1 // pred_check
      _
    $region15: #{tpu_custom_call.1} parent=1 // pred_check_branch
      %46 = sbr.rel (0) target = $region17
    $region16: #{tpu_custom_call.1} parent=1 // pred_region
      _
    $region17: #{tpu_custom_call.1} parent=1 // pred_fallthru
      _
    // Predicated region
    $region18: #{tpu_custom_call.1} parent=1 // pred_check
      _
    $region19: #{tpu_custom_call.1} parent=1 // pred_check_branch
      %48 = sbr.rel (0) target = $region21
    $region20: #{tpu_custom_call.1} parent=1 // pred_region
      %50 = vsyncadd [#allocation6], 0
      %s51 = sshll.u32 %s4, 4
      %s52 = int_to_ptr.hbm [resolvable:$true] %s51
      %s53 = sshll.u32 [#allocation7], 4
      %s54 = int_to_ptr.vmem [resolvable:$true] %s53
      %59 = dma.hbm_to_vmem [thread:$0]  %s52, 512, %s54, [#allocation6], 128, 128, 8
    $region21: #{tpu_custom_call.1} parent=1 // pred_fallthru
      _
    // Predicated region
    $region22: #{tpu_custom_call.1} parent=1 // pred_check
      _
    $region23: #{tpu_custom_call.1} parent=1 // pred_check_branch
      %61 = sbr.rel (0) target = $region25
    $region24: #{tpu_custom_call.1} parent=1 // pred_region
      %63 = vsyncadd [#allocation9], 0
      %s64 = sshll.u32 %s5, 4
      %s65 = int_to_ptr.hbm [resolvable:$true] %s64
      %s66 = sshll.u32 [#allocation8], 4
      %s67 = int_to_ptr.vmem [resolvable:$true] %s66
      %72 = dma.hbm_to_vmem [thread:$0]  %s65, 512, %s67, [#allocation9], 128, 128, 8
    $region25: #{tpu_custom_call.1} parent=1 // pred_fallthru
      _
    // Predicated region
    $region26: #{tpu_custom_call.1} parent=1 // pred_check
      _
    $region27: #{tpu_custom_call.1} parent=1 // pred_check_branch
      %74 = sbr.rel (0) target = $region29
    $region28: #{tpu_custom_call.1} parent=1 // pred_region
      _
    $region29: #{tpu_custom_call.1} parent=1 // pred_fallthru
      _
    // Predicated region
    $region30: #{tpu_custom_call.1} parent=1 // pred_check
      _
    $region31: #{tpu_custom_call.1} parent=1 // pred_check_branch
      %76 = sbr.rel (0) target = $region33
    $region32: #{tpu_custom_call.1} parent=1 // pred_region
      _
    $region33: #{tpu_custom_call.1} parent=1 // pred_fallthru
      _
    // Predicated region
    $region34: #{tpu_custom_call.1} parent=1 // pred_check
      _
    $region35: #{tpu_custom_call.1} parent=1 // pred_check_branch
      %78 = sbr.rel (0) target = $region37
    $region36: #{tpu_custom_call.1} parent=1 // pred_region
      _
    $region37: #{tpu_custom_call.1} parent=1 // pred_fallthru
      _
    // Predicated region
    $region38: #{tpu_custom_call.1} parent=1 // pred_check
      _
    $region39: #{tpu_custom_call.1} parent=1 // pred_check_branch
      %80 = sbr.rel (0) target = $region41
    $region40: #{tpu_custom_call.1} parent=1 // pred_region
      %82 = dma.done [#allocation4], 1024
    $region41: #{tpu_custom_call.1} parent=1 // pred_fallthru
      _
    // Predicated region
    $region42: #{tpu_custom_call.1} parent=1 // pred_check
      _
    $region43: #{tpu_custom_call.1} parent=1 // pred_check_branch
      %84 = sbr.rel (0) target = $region45
    $region44: #{tpu_custom_call.1} parent=1 // pred_region
      %86 = dma.done [#allocation6], 512
    $region45: #{tpu_custom_call.1} parent=1 // pred_fallthru
      _
    // Predicated region
    $region46: #{tpu_custom_call.1} parent=1 // pred_check
      _
    $region47: #{tpu_custom_call.1} parent=1 // pred_check_branch
      %88 = sbr.rel (0) target = $region49
    $region48: #{tpu_custom_call.1} parent=1 // pred_region
      %90 = dma.done [#allocation6], 512
    $region49: #{tpu_custom_call.1} parent=1 // pred_fallthru
      _
    // Predicated region
    $region50: #{tpu_custom_call.1} parent=1 // pred_check
      _
    $region51: #{tpu_custom_call.1} parent=1 // pred_check_branch
      %92 = sbr.rel (0) target = $region53
    $region52: #{tpu_custom_call.1} parent=1 // pred_region
      %94 = dma.done [#allocation9], 512
    $region53: #{tpu_custom_call.1} parent=1 // pred_fallthru
      _
    %v95 = vld [vmem:[#allocation3] sm:$0xff]
    %v96 = vld [vmem:[#allocation3 + $0x8] sm:$0xff]
    %v97 = vld [vmem:[#allocation3 + $0x10] sm:$0xff]
    %v98 = vld [vmem:[#allocation3 + $0x18] sm:$0xff]
    %v99 = vld [vmem:[#allocation3 + $0x20] sm:$0xff]
    %v100 = vld [vmem:[#allocation3 + $0x28] sm:$0xff]
    %v101 = vld [vmem:[#allocation3 + $0x30] sm:$0xff]
    %v102 = vld [vmem:[#allocation3 + $0x38] sm:$0xff]
    %v103 = vld [vmem:[%s1] sm:$0xff]
    %v104 = vld [vmem:[%s1 + $0x8] sm:$0xff]
    %v105 = vld [vmem:[%s1 + $0x10] sm:$0xff]
    %v106 = vld [vmem:[%s1 + $0x18] sm:$0xff]
    %v107 = vld [vmem:[%s3] sm:$0x1]
    %v109 = vperm.slane %v107, 0
    %vm111 = vcmask 261120
    %v113 = vsel %vm111, %v95, 0
    %v116 = vsel %vm111, %v96, 0
    %v119 = vsel %vm111, %v97, 0
    %v122 = vsel %vm111, %v98, 0
    %v125 = vsel %vm111, %v99, 0
    %v128 = vsel %vm111, %v100, 0
    %v131 = vsel %vm111, %v101, 0
    %v134 = vsel %vm111, %v102, 0
    %136 = vmatpush.msra.mxu0 0.0
    %137 = vmatpush.msra.mxu0 0.0
    %138 = vmatpush.msra.mxu0 0.0
    %139 = vmatpush.msra.mxu0 0.0
    %140 = vmatpush.msra.mxu0 0.0
    %141 = vmatpush.msra.mxu0 0.0
    %142 = vmatpush.msra.mxu0 0.0
    %143 = vmatpush.msra.mxu0 0.0
    %144 = vmatpush.msra.mxu0 0.0
    %145 = vmatpush.msra.mxu0 0.0
    %146 = vmatpush.msra.mxu0 0.0
    %147 = vmatpush.msra.mxu0 0.0
    %148 = vmatpush.msra.mxu0 %v106
    %149 = vmatpush.msra.mxu0 %v105
    %150 = vmatpush.msra.mxu0 %v104
    %151 = vmatpush.msra.mxu0 %v103
    %152 = vmatmul.f32.gmra.mxu0 %v113
    %v153 = vpop.f32.mrf.mxu0
    %v154 = vadd.f32 %v109, %v153
    %155 = vmatmul.f32.gmra.mxu0 %v116
    %v156 = vpop.f32.mrf.mxu0
    %v157 = vadd.f32 %v109, %v156
    %158 = vmatmul.f32.gmra.mxu0 %v119
    %v159 = vpop.f32.mrf.mxu0
    %v160 = vadd.f32 %v109, %v159
    %161 = vmatmul.f32.gmra.mxu0 %v122
    %v162 = vpop.f32.mrf.mxu0
    %v163 = vadd.f32 %v109, %v162
    %164 = vmatmul.f32.gmra.mxu0 %v125
    %v165 = vpop.f32.mrf.mxu0
    %v166 = vadd.f32 %v109, %v165
    %167 = vmatmul.f32.gmra.mxu0 %v128
    %v168 = vpop.f32.mrf.mxu0
    %v169 = vadd.f32 %v109, %v168
    %170 = vmatmul.f32.gmra.mxu0 %v131
    %v171 = vpop.f32.mrf.mxu0
    %v172 = vadd.f32 %v109, %v171
    %173 = vmatmul.f32.gmra.mxu0 %v134
    %v174 = vpop.f32.mrf.mxu0
    %v175 = vadd.f32 %v109, %v174
    %176 = vdwg.mxu0
    %v177 = vld [vmem:[#allocation5] sm:$0xff]
    %v178 = vld [vmem:[#allocation5 + $0x8] sm:$0xff]
    %v179 = vld [vmem:[#allocation5 + $0x10] sm:$0xff]
    %v180 = vld [vmem:[#allocation5 + $0x18] sm:$0xff]
    %v182 = vsel %vm111, 0.0, 0
    %184 = vmatpush.msra.mxu0 0.0
    %185 = vmatpush.msra.mxu0 0.0
    %186 = vmatpush.msra.mxu0 0.0
    %187 = vmatpush.msra.mxu0 0.0
    %188 = vmatpush.msra.mxu0 0.0
    %189 = vmatpush.msra.mxu0 0.0
    %190 = vmatpush.msra.mxu0 0.0
    %191 = vmatpush.msra.mxu0 0.0
    %192 = vmatpush.msra.mxu0 0.0
    %193 = vmatpush.msra.mxu0 0.0
    %194 = vmatpush.msra.mxu0 0.0
    %195 = vmatpush.msra.mxu0 0.0
    %196 = vmatpush.msra.mxu0 %v180
    %197 = vmatpush.msra.mxu0 %v179
    %198 = vmatpush.msra.mxu0 %v178
    %199 = vmatpush.msra.mxu0 %v177
    %200 = vmatmul.f32.gmra.mxu0 %v182
    %v201 = vpop.f32.mrf.mxu0
    %v202 = vadd.f32 0.0, %v201
    %203 = vdwg.mxu0
    %v204 = vadd.f32 %v154, %v202
    %v205 = vxor.u32 %v204, 2147483648
    %v206 = vmul.f32 %v205, 1.442695
    %v207 = vpow.pop %v206
    %v208 = vadd.f32 %v207, 1.0
    %v209 = vrcp.pop %v208
    %v210 = vmul.f32 %v208, %v209
    %v211 = vsub.f32 1.0, %v210
    %v212 = vmul.f32 %v209, %v211
    %v213 = vadd.f32 %v209, %v212
    %vm214 = vweird.f32 %v208
    %vm215 = vweird.f32 %v209
    %vm216 = vmor %vm214, %vm215
    %v217 = vsel %vm216, %v209, %v213
    %v218 = vand.u32 2147483647, %v208
    %vm219 = vcmp.eq.f32.partialorder %v218, 8.507059e+37
    %v220 = vand.u32 %v208, 2147483648
    %v221 = vor.u32 1.1754944e-38, %v220
    %v222 = vsel %vm219, %v221, %v217
    %v223 = vmul.f32 1.0, %v222
    %v224 = vtanh.pop %v204
    %v225 = vmul.f32 %v223, 0.0
    %227 = vrot.lane.b32.xlu0 %v224, 64
    %v228 = vpop.permute.xlu0 %227
    %v230 = vmul.f32 %v223, %v228
    %232 = vrot.lane.b32.xlu0 %v230, 32
    %v233 = vpop.permute.xlu0 %232
    %v235 = vadd.f32 %v225, %v233
    %v236 = vtanh.pop %v235
    %238 = vrot.lane.b32.xlu0 %v236, 64
    %v239 = vpop.permute.xlu0 %238
    %v241 = vmul.f32 %v223, %v239
    %243 = vrot.lane.b32.xlu0 %v241, 32
    %v244 = vpop.permute.xlu0 %243
    %246 = vst.msk [vmem:[#allocation2] sm:$0xff] %vm111, %v244
    %v247 = vsel %vm111, %v244, 0
    %249 = vmatpush.msra.mxu0 0.0
    %250 = vmatpush.msra.mxu0 0.0
    %251 = vmatpush.msra.mxu0 0.0
    %252 = vmatpush.msra.mxu0 0.0
    %253 = vmatpush.msra.mxu0 0.0
    %254 = vmatpush.msra.mxu0 0.0
    %255 = vmatpush.msra.mxu0 0.0
    %256 = vmatpush.msra.mxu0 0.0
    %257 = vmatpush.msra.mxu0 0.0
    %258 = vmatpush.msra.mxu0 0.0
    %259 = vmatpush.msra.mxu0 0.0
    %260 = vmatpush.msra.mxu0 0.0
    %261 = vmatpush.msra.mxu0 %v180
    %262 = vmatpush.msra.mxu0 %v179
    %263 = vmatpush.msra.mxu0 %v178
    %264 = vmatpush.msra.mxu0 %v177
    %265 = vmatmul.f32.gmra.mxu0 %v247
    %v266 = vpop.f32.mrf.mxu0
    %v267 = vadd.f32 0.0, %v266
    %268 = vdwg.mxu0
    %v269 = vadd.f32 %v157, %v267
    %v270 = vxor.u32 %v269, 2147483648
    %v271 = vmul.f32 %v270, 1.442695
    %v272 = vpow.pop %v271
    %v273 = vadd.f32 %v272, 1.0
    %v274 = vrcp.pop %v273
    %v275 = vmul.f32 %v273, %v274
    %v276 = vsub.f32 1.0, %v275
    %v277 = vmul.f32 %v274, %v276
    %v278 = vadd.f32 %v274, %v277
    %vm279 = vweird.f32 %v273
    %vm280 = vweird.f32 %v274
    %vm281 = vmor %vm279, %vm280
    %v282 = vsel %vm281, %v274, %v278
    %v283 = vand.u32 2147483647, %v273
    %vm284 = vcmp.eq.f32.partialorder %v283, 8.507059e+37
    %v285 = vand.u32 %v273, 2147483648
    %v286 = vor.u32 1.1754944e-38, %v285
    %v287 = vsel %vm284, %v286, %v282
    %v288 = vmul.f32 1.0, %v287
    %v289 = vtanh.pop %v269
    %v290 = vmul.f32 %v288, %v235
    %292 = vrot.lane.b32.xlu0 %v289, 64
    %v293 = vpop.permute.xlu0 %292
    %v295 = vmul.f32 %v288, %v293
    %297 = vrot.lane.b32.xlu0 %v295, 32
    %v298 = vpop.permute.xlu0 %297
    %v300 = vadd.f32 %v290, %v298
    %v301 = vtanh.pop %v300
    %303 = vrot.lane.b32.xlu0 %v301, 64
    %v304 = vpop.permute.xlu0 %303
    %v306 = vmul.f32 %v288, %v304
    %308 = vrot.lane.b32.xlu0 %v306, 32
    %v309 = vpop.permute.xlu0 %308
    %s311 = scalar_lea.vmem [#allocation2], 8
    %312 = vst.msk [vmem:[%s311] sm:$0xff] %vm111, %v309
    %v313 = vsel %vm111, %v309, 0
    %315 = vmatpush.msra.mxu0 0.0
    %316 = vmatpush.msra.mxu0 0.0
    %317 = vmatpush.msra.mxu0 0.0
    %318 = vmatpush.msra.mxu0 0.0
    %319 = vmatpush.msra.mxu0 0.0
    %320 = vmatpush.msra.mxu0 0.0
    %321 = vmatpush.msra.mxu0 0.0
    %322 = vmatpush.msra.mxu0 0.0
    %323 = vmatpush.msra.mxu0 0.0
    %324 = vmatpush.msra.mxu0 0.0
    %325 = vmatpush.msra.mxu0 0.0
    %326 = vmatpush.msra.mxu0 0.0
    %327 = vmatpush.msra.mxu0 %v180
    %328 = vmatpush.msra.mxu0 %v179
    %329 = vmatpush.msra.mxu0 %v178
    %330 = vmatpush.msra.mxu0 %v177
    %331 = vmatmul.f32.gmra.mxu0 %v313
    %v332 = vpop.f32.mrf.mxu0
    %v333 = vadd.f32 0.0, %v332
    %334 = vdwg.mxu0
    %v335 = vadd.f32 %v160, %v333
    %v336 = vxor.u32 %v335, 2147483648
    %v337 = vmul.f32 %v336, 1.442695
    %v338 = vpow.pop %v337
    %v339 = vadd.f32 %v338, 1.0
    %v340 = vrcp.pop %v339
    %v341 = vmul.f32 %v339, %v340
    %v342 = vsub.f32 1.0, %v341
    %v343 = vmul.f32 %v340, %v342
    %v344 = vadd.f32 %v340, %v343
    %vm345 = vweird.f32 %v339
    %vm346 = vweird.f32 %v340
    %vm347 = vmor %vm345, %vm346
    %v348 = vsel %vm347, %v340, %v344
    %v349 = vand.u32 2147483647, %v339
    %vm350 = vcmp.eq.f32.partialorder %v349, 8.507059e+37
    %v351 = vand.u32 %v339, 2147483648
    %v352 = vor.u32 1.1754944e-38, %v351
    %v353 = vsel %vm350, %v352, %v348
    %v354 = vmul.f32 1.0, %v353
    %v355 = vtanh.pop %v335
    %v356 = vmul.f32 %v354, %v300
    %358 = vrot.lane.b32.xlu0 %v355, 64
    %v359 = vpop.permute.xlu0 %358
    %v361 = vmul.f32 %v354, %v359
    %363 = vrot.lane.b32.xlu0 %v361, 32
    %v364 = vpop.permute.xlu0 %363
    %v366 = vadd.f32 %v356, %v364
    %v367 = vtanh.pop %v366
    %369 = vrot.lane.b32.xlu0 %v367, 64
    %v370 = vpop.permute.xlu0 %369
    %v372 = vmul.f32 %v354, %v370
    %374 = vrot.lane.b32.xlu0 %v372, 32
    %v375 = vpop.permute.xlu0 %374
    %s377 = scalar_lea.vmem [#allocation2], 16
    %378 = vst.msk [vmem:[%s377] sm:$0xff] %vm111, %v375
    %v379 = vsel %vm111, %v375, 0
    %381 = vmatpush.msra.mxu0 0.0
    %382 = vmatpush.msra.mxu0 0.0
    %383 = vmatpush.msra.mxu0 0.0
    %384 = vmatpush.msra.mxu0 0.0
    %385 = vmatpush.msra.mxu0 0.0
    %386 = vmatpush.msra.mxu0 0.0
    %387 = vmatpush.msra.mxu0 0.0
    %388 = vmatpush.msra.mxu0 0.0
    %389 = vmatpush.msra.mxu0 0.0
    %390 = vmatpush.msra.mxu0 0.0
    %391 = vmatpush.msra.mxu0 0.0
    %392 = vmatpush.msra.mxu0 0.0
    %393 = vmatpush.msra.mxu0 %v180
    %394 = vmatpush.msra.mxu0 %v179
    %395 = vmatpush.msra.mxu0 %v178
    %396 = vmatpush.msra.mxu0 %v177
    %397 = vmatmul.f32.gmra.mxu0 %v379
    %v398 = vpop.f32.mrf.mxu0
    %v399 = vadd.f32 0.0, %v398
    %400 = vdwg.mxu0
    %v401 = vadd.f32 %v163, %v399
    %v402 = vxor.u32 %v401, 2147483648
    %v403 = vmul.f32 %v402, 1.442695
    %v404 = vpow.pop %v403
    %v405 = vadd.f32 %v404, 1.0
    %v406 = vrcp.pop %v405
    %v407 = vmul.f32 %v405, %v406
    %v408 = vsub.f32 1.0, %v407
    %v409 = vmul.f32 %v406, %v408
    %v410 = vadd.f32 %v406, %v409
    %vm411 = vweird.f32 %v405
    %vm412 = vweird.f32 %v406
    %vm413 = vmor %vm411, %vm412
    %v414 = vsel %vm413, %v406, %v410
    %v415 = vand.u32 2147483647, %v405
    %vm416 = vcmp.eq.f32.partialorder %v415, 8.507059e+37
    %v417 = vand.u32 %v405, 2147483648
    %v418 = vor.u32 1.1754944e-38, %v417
    %v419 = vsel %vm416, %v418, %v414
    %v420 = vmul.f32 1.0, %v419
    %v421 = vtanh.pop %v401
    %v422 = vmul.f32 %v420, %v366
    %424 = vrot.lane.b32.xlu0 %v421, 64
    %v425 = vpop.permute.xlu0 %424
    %v427 = vmul.f32 %v420, %v425
    %429 = vrot.lane.b32.xlu0 %v427, 32
    %v430 = vpop.permute.xlu0 %429
    %v432 = vadd.f32 %v422, %v430
    %v433 = vtanh.pop %v432
    %435 = vrot.lane.b32.xlu0 %v433, 64
    %v436 = vpop.permute.xlu0 %435
    %v438 = vmul.f32 %v420, %v436
    %440 = vrot.lane.b32.xlu0 %v438, 32
    %v441 = vpop.permute.xlu0 %440
    %s443 = scalar_lea.vmem [#allocation2], 24
    %444 = vst.msk [vmem:[%s443] sm:$0xff] %vm111, %v441
    %v445 = vsel %vm111, %v441, 0
    %447 = vmatpush.msra.mxu0 0.0
    %448 = vmatpush.msra.mxu0 0.0
    %449 = vmatpush.msra.mxu0 0.0
    %450 = vmatpush.msra.mxu0 0.0
    %451 = vmatpush.msra.mxu0 0.0
    %452 = vmatpush.msra.mxu0 0.0
    %453 = vmatpush.msra.mxu0 0.0
    %454 = vmatpush.msra.mxu0 0.0
    %455 = vmatpush.msra.mxu0 0.0
    %456 = vmatpush.msra.mxu0 0.0
    %457 = vmatpush.msra.mxu0 0.0
    %458 = vmatpush.msra.mxu0 0.0
    %459 = vmatpush.msra.mxu0 %v180
    %460 = vmatpush.msra.mxu0 %v179
    %461 = vmatpush.msra.mxu0 %v178
    %462 = vmatpush.msra.mxu0 %v177
    %463 = vmatmul.f32.gmra.mxu0 %v445
    %v464 = vpop.f32.mrf.mxu0
    %v465 = vadd.f32 0.0, %v464
    %466 = vdwg.mxu0
    %v467 = vadd.f32 %v166, %v465
    %v468 = vxor.u32 %v467, 2147483648
    %v469 = vmul.f32 %v468, 1.442695
    %v470 = vpow.pop %v469
    %v471 = vadd.f32 %v470, 1.0
    %v472 = vrcp.pop %v471
    %v473 = vmul.f32 %v471, %v472
    %v474 = vsub.f32 1.0, %v473
    %v475 = vmul.f32 %v472, %v474
    %v476 = vadd.f32 %v472, %v475
    %vm477 = vweird.f32 %v471
    %vm478 = vweird.f32 %v472
    %vm479 = vmor %vm477, %vm478
    %v480 = vsel %vm479, %v472, %v476
    %v481 = vand.u32 2147483647, %v471
    %vm482 = vcmp.eq.f32.partialorder %v481, 8.507059e+37
    %v483 = vand.u32 %v471, 2147483648
    %v484 = vor.u32 1.1754944e-38, %v483
    %v485 = vsel %vm482, %v484, %v480
    %v486 = vmul.f32 1.0, %v485
    %v487 = vtanh.pop %v467
    %v488 = vmul.f32 %v486, %v432
    %490 = vrot.lane.b32.xlu0 %v487, 64
    %v491 = vpop.permute.xlu0 %490
    %v493 = vmul.f32 %v486, %v491
    %495 = vrot.lane.b32.xlu0 %v493, 32
    %v496 = vpop.permute.xlu0 %495
    %v498 = vadd.f32 %v488, %v496
    %v499 = vtanh.pop %v498
    %501 = vrot.lane.b32.xlu0 %v499, 64
    %v502 = vpop.permute.xlu0 %501
    %v504 = vmul.f32 %v486, %v502
    %506 = vrot.lane.b32.xlu0 %v504, 32
    %v507 = vpop.permute.xlu0 %506
    %s509 = scalar_lea.vmem [#allocation2], 32
    %510 = vst.msk [vmem:[%s509] sm:$0xff] %vm111, %v507
    %v511 = vsel %vm111, %v507, 0
    %513 = vmatpush.msra.mxu0 0.0
    %514 = vmatpush.msra.mxu0 0.0
    %515 = vmatpush.msra.mxu0 0.0
    %516 = vmatpush.msra.mxu0 0.0
    %517 = vmatpush.msra.mxu0 0.0
    %518 = vmatpush.msra.mxu0 0.0
    %519 = vmatpush.msra.mxu0 0.0
    %520 = vmatpush.msra.mxu0 0.0
    %521 = vmatpush.msra.mxu0 0.0
    %522 = vmatpush.msra.mxu0 0.0
    %523 = vmatpush.msra.mxu0 0.0
    %524 = vmatpush.msra.mxu0 0.0
    %525 = vmatpush.msra.mxu0 %v180
    %526 = vmatpush.msra.mxu0 %v179
    %527 = vmatpush.msra.mxu0 %v178
    %528 = vmatpush.msra.mxu0 %v177
    %529 = vmatmul.f32.gmra.mxu0 %v511
    %v530 = vpop.f32.mrf.mxu0
    %v531 = vadd.f32 0.0, %v530
    %532 = vdwg.mxu0
    %v533 = vadd.f32 %v169, %v531
    %v534 = vxor.u32 %v533, 2147483648
    %v535 = vmul.f32 %v534, 1.442695
    %v536 = vpow.pop %v535
    %v537 = vadd.f32 %v536, 1.0
    %v538 = vrcp.pop %v537
    %v539 = vmul.f32 %v537, %v538
    %v540 = vsub.f32 1.0, %v539
    %v541 = vmul.f32 %v538, %v540
    %v542 = vadd.f32 %v538, %v541
    %vm543 = vweird.f32 %v537
    %vm544 = vweird.f32 %v538
    %vm545 = vmor %vm543, %vm544
    %v546 = vsel %vm545, %v538, %v542
    %v547 = vand.u32 2147483647, %v537
    %vm548 = vcmp.eq.f32.partialorder %v547, 8.507059e+37
    %v549 = vand.u32 %v537, 2147483648
    %v550 = vor.u32 1.1754944e-38, %v549
    %v551 = vsel %vm548, %v550, %v546
    %v552 = vmul.f32 1.0, %v551
    %v553 = vtanh.pop %v533
    %v554 = vmul.f32 %v552, %v498
    %556 = vrot.lane.b32.xlu0 %v553, 64
    %v557 = vpop.permute.xlu0 %556
    %v559 = vmul.f32 %v552, %v557
    %561 = vrot.lane.b32.xlu0 %v559, 32
    %v562 = vpop.permute.xlu0 %561
    %v564 = vadd.f32 %v554, %v562
    %v565 = vtanh.pop %v564
    %567 = vrot.lane.b32.xlu0 %v565, 64
    %v568 = vpop.permute.xlu0 %567
    %v570 = vmul.f32 %v552, %v568
    %572 = vrot.lane.b32.xlu0 %v570, 32
    %v573 = vpop.permute.xlu0 %572
    %s575 = scalar_lea.vmem [#allocation2], 40
    %576 = vst.msk [vmem:[%s575] sm:$0xff] %vm111, %v573
    %v577 = vsel %vm111, %v573, 0
    %579 = vmatpush.msra.mxu0 0.0
    %580 = vmatpush.msra.mxu0 0.0
    %581 = vmatpush.msra.mxu0 0.0
    %582 = vmatpush.msra.mxu0 0.0
    %583 = vmatpush.msra.mxu0 0.0
    %584 = vmatpush.msra.mxu0 0.0
    %585 = vmatpush.msra.mxu0 0.0
    %586 = vmatpush.msra.mxu0 0.0
    %587 = vmatpush.msra.mxu0 0.0
    %588 = vmatpush.msra.mxu0 0.0
    %589 = vmatpush.msra.mxu0 0.0
    %590 = vmatpush.msra.mxu0 0.0
    %591 = vmatpush.msra.mxu0 %v180
    %592 = vmatpush.msra.mxu0 %v179
    %593 = vmatpush.msra.mxu0 %v178
    %594 = vmatpush.msra.mxu0 %v177
    %595 = vmatmul.f32.gmra.mxu0 %v577
    %v596 = vpop.f32.mrf.mxu0
    %v597 = vadd.f32 0.0, %v596
    %598 = vdwg.mxu0
    %v599 = vadd.f32 %v172, %v597
    %v600 = vxor.u32 %v599, 2147483648
    %v601 = vmul.f32 %v600, 1.442695
    %v602 = vpow.pop %v601
    %v603 = vadd.f32 %v602, 1.0
    %v604 = vrcp.pop %v603
    %v605 = vmul.f32 %v603, %v604
    %v606 = vsub.f32 1.0, %v605
    %v607 = vmul.f32 %v604, %v606
    %v608 = vadd.f32 %v604, %v607
    %vm609 = vweird.f32 %v603
    %vm610 = vweird.f32 %v604
    %vm611 = vmor %vm609, %vm610
    %v612 = vsel %vm611, %v604, %v608
    %v613 = vand.u32 2147483647, %v603
    %vm614 = vcmp.eq.f32.partialorder %v613, 8.507059e+37
    %v615 = vand.u32 %v603, 2147483648
    %v616 = vor.u32 1.1754944e-38, %v615
    %v617 = vsel %vm614, %v616, %v612
    %v618 = vmul.f32 1.0, %v617
    %v619 = vtanh.pop %v599
    %v620 = vmul.f32 %v618, %v564
    %622 = vrot.lane.b32.xlu0 %v619, 64
    %v623 = vpop.permute.xlu0 %622
    %v625 = vmul.f32 %v618, %v623
    %627 = vrot.lane.b32.xlu0 %v625, 32
    %v628 = vpop.permute.xlu0 %627
    %v630 = vadd.f32 %v620, %v628
    %v631 = vtanh.pop %v630
    %633 = vrot.lane.b32.xlu0 %v631, 64
    %v634 = vpop.permute.xlu0 %633
    %v636 = vmul.f32 %v618, %v634
    %638 = vrot.lane.b32.xlu0 %v636, 32
    %v639 = vpop.permute.xlu0 %638
    %s641 = scalar_lea.vmem [#allocation2], 48
    %642 = vst.msk [vmem:[%s641] sm:$0xff] %vm111, %v639
    %v643 = vsel %vm111, %v639, 0
    %645 = vmatpush.msra.mxu0 0.0
    %646 = vmatpush.msra.mxu0 0.0
    %647 = vmatpush.msra.mxu0 0.0
    %648 = vmatpush.msra.mxu0 0.0
    %649 = vmatpush.msra.mxu0 0.0
    %650 = vmatpush.msra.mxu0 0.0
    %651 = vmatpush.msra.mxu0 0.0
    %652 = vmatpush.msra.mxu0 0.0
    %653 = vmatpush.msra.mxu0 0.0
    %654 = vmatpush.msra.mxu0 0.0
    %655 = vmatpush.msra.mxu0 0.0
    %656 = vmatpush.msra.mxu0 0.0
    %657 = vmatpush.msra.mxu0 %v180
    %658 = vmatpush.msra.mxu0 %v179
    %659 = vmatpush.msra.mxu0 %v178
    %660 = vmatpush.msra.mxu0 %v177
    %661 = vmatmul.f32.gmra.mxu0 %v643
    %v662 = vpop.f32.mrf.mxu0
    %v663 = vadd.f32 0.0, %v662
    %664 = vdwg.mxu0
    %v665 = vadd.f32 %v175, %v663
    %v666 = vxor.u32 %v665, 2147483648
    %v667 = vmul.f32 %v666, 1.442695
    %v668 = vpow.pop %v667
    %v669 = vadd.f32 %v668, 1.0
    %v670 = vrcp.pop %v669
    %v671 = vmul.f32 %v669, %v670
    %v672 = vsub.f32 1.0, %v671
    %v673 = vmul.f32 %v670, %v672
    %v674 = vadd.f32 %v670, %v673
    %vm675 = vweird.f32 %v669
    %vm676 = vweird.f32 %v670
    %vm677 = vmor %vm675, %vm676
    %v678 = vsel %vm677, %v670, %v674
    %v679 = vand.u32 2147483647, %v669
    %vm680 = vcmp.eq.f32.partialorder %v679, 8.507059e+37
    %v681 = vand.u32 %v669, 2147483648
    %v682 = vor.u32 1.1754944e-38, %v681
    %v683 = vsel %vm680, %v682, %v678
    %v684 = vmul.f32 1.0, %v683
    %v685 = vtanh.pop %v665
    %v686 = vmul.f32 %v684, %v630
    %688 = vrot.lane.b32.xlu0 %v685, 64
    %v689 = vpop.permute.xlu0 %688
    %v691 = vmul.f32 %v684, %v689
    %693 = vrot.lane.b32.xlu0 %v691, 32
    %v694 = vpop.permute.xlu0 %693
    %v696 = vadd.f32 %v686, %v694
    %v697 = vtanh.pop %v696
    %699 = vrot.lane.b32.xlu0 %v697, 64
    %v700 = vpop.permute.xlu0 %699
    %v702 = vmul.f32 %v684, %v700
    %704 = vrot.lane.b32.xlu0 %v702, 32
    %v705 = vpop.permute.xlu0 %704
    %s707 = scalar_lea.vmem [#allocation2], 56
    %708 = vst.msk [vmem:[%s707] sm:$0xff] %vm111, %v705
    %v709 = vld [vmem:[#allocation2] sm:$0xff]
    %v710 = vld [vmem:[#allocation2 + $0x8] sm:$0xff]
    %v711 = vld [vmem:[#allocation2 + $0x10] sm:$0xff]
    %v712 = vld [vmem:[#allocation2 + $0x18] sm:$0xff]
    %v713 = vld [vmem:[#allocation2 + $0x20] sm:$0xff]
    %v714 = vld [vmem:[#allocation2 + $0x28] sm:$0xff]
    %v715 = vld [vmem:[#allocation2 + $0x30] sm:$0xff]
    %v716 = vld [vmem:[#allocation2 + $0x38] sm:$0xff]
    %v717 = vld [vmem:[#allocation7] sm:$0xff]
    %v718 = vld [vmem:[#allocation7 + $0x8] sm:$0xff]
    %v719 = vld [vmem:[#allocation7 + $0x10] sm:$0xff]
    %v720 = vld [vmem:[#allocation7 + $0x18] sm:$0xff]
    %v721 = vld [vmem:[%s6] sm:$0x1]
    %v723 = vperm.slane %v721, 0
    %v726 = vsel %vm111, %v709, 0
    %v729 = vsel %vm111, %v710, 0
    %v732 = vsel %vm111, %v711, 0
    %v735 = vsel %vm111, %v712, 0
    %v738 = vsel %vm111, %v713, 0
    %v741 = vsel %vm111, %v714, 0
    %v744 = vsel %vm111, %v715, 0
    %v747 = vsel %vm111, %v716, 0
    %749 = vmatpush.msra.mxu0 0.0
    %750 = vmatpush.msra.mxu0 0.0
    %751 = vmatpush.msra.mxu0 0.0
    %752 = vmatpush.msra.mxu0 0.0
    %753 = vmatpush.msra.mxu0 0.0
    %754 = vmatpush.msra.mxu0 0.0
    %755 = vmatpush.msra.mxu0 0.0
    %756 = vmatpush.msra.mxu0 0.0
    %757 = vmatpush.msra.mxu0 0.0
    %758 = vmatpush.msra.mxu0 0.0
    %759 = vmatpush.msra.mxu0 0.0
    %760 = vmatpush.msra.mxu0 0.0
    %761 = vmatpush.msra.mxu0 %v720
    %762 = vmatpush.msra.mxu0 %v719
    %763 = vmatpush.msra.mxu0 %v718
    %764 = vmatpush.msra.mxu0 %v717
    %765 = vmatmul.f32.gmra.mxu0 %v726
    %v766 = vpop.f32.mrf.mxu0
    %v767 = vadd.f32 %v723, %v766
    %768 = vmatmul.f32.gmra.mxu0 %v729
    %v769 = vpop.f32.mrf.mxu0
    %v770 = vadd.f32 %v723, %v769
    %771 = vmatmul.f32.gmra.mxu0 %v732
    %v772 = vpop.f32.mrf.mxu0
    %v773 = vadd.f32 %v723, %v772
    %774 = vmatmul.f32.gmra.mxu0 %v735
    %v775 = vpop.f32.mrf.mxu0
    %v776 = vadd.f32 %v723, %v775
    %777 = vmatmul.f32.gmra.mxu0 %v738
    %v778 = vpop.f32.mrf.mxu0
    %v779 = vadd.f32 %v723, %v778
    %780 = vmatmul.f32.gmra.mxu0 %v741
    %v781 = vpop.f32.mrf.mxu0
    %v782 = vadd.f32 %v723, %v781
    %783 = vmatmul.f32.gmra.mxu0 %v744
    %v784 = vpop.f32.mrf.mxu0
    %v785 = vadd.f32 %v723, %v784
    %786 = vmatmul.f32.gmra.mxu0 %v747
    %v787 = vpop.f32.mrf.mxu0
    %v788 = vadd.f32 %v723, %v787
    %789 = vdwg.mxu0
    %v790 = vld [vmem:[#allocation8] sm:$0xff]
    %v791 = vld [vmem:[#allocation8 + $0x8] sm:$0xff]
    %v792 = vld [vmem:[#allocation8 + $0x10] sm:$0xff]
    %v793 = vld [vmem:[#allocation8 + $0x18] sm:$0xff]
    %794 = vmatpush.msra.mxu0 0.0
    %795 = vmatpush.msra.mxu0 0.0
    %796 = vmatpush.msra.mxu0 0.0
    %797 = vmatpush.msra.mxu0 0.0
    %798 = vmatpush.msra.mxu0 0.0
    %799 = vmatpush.msra.mxu0 0.0
    %800 = vmatpush.msra.mxu0 0.0
    %801 = vmatpush.msra.mxu0 0.0
    %802 = vmatpush.msra.mxu0 0.0
    %803 = vmatpush.msra.mxu0 0.0
    %804 = vmatpush.msra.mxu0 0.0
    %805 = vmatpush.msra.mxu0 0.0
    %806 = vmatpush.msra.mxu0 %v793
    %807 = vmatpush.msra.mxu0 %v792
    %808 = vmatpush.msra.mxu0 %v791
    %809 = vmatpush.msra.mxu0 %v790
    %810 = vmatmul.f32.gmra.mxu0 %v182
    %v811 = vpop.f32.mrf.mxu0
    %v812 = vadd.f32 0.0, %v811
    %813 = vdwg.mxu0
    %v814 = vadd.f32 %v767, %v812
    %v815 = vxor.u32 %v814, 2147483648
    %v816 = vmul.f32 %v815, 1.442695
    %v817 = vpow.pop %v816
    %v818 = vadd.f32 %v817, 1.0
    %v819 = vrcp.pop %v818
    %v820 = vmul.f32 %v818, %v819
    %v821 = vsub.f32 1.0, %v820
    %v822 = vmul.f32 %v819, %v821
    %v823 = vadd.f32 %v819, %v822
    %vm824 = vweird.f32 %v818
    %vm825 = vweird.f32 %v819
    %vm826 = vmor %vm824, %vm825
    %v827 = vsel %vm826, %v819, %v823
    %v828 = vand.u32 2147483647, %v818
    %vm829 = vcmp.eq.f32.partialorder %v828, 8.507059e+37
    %v830 = vand.u32 %v818, 2147483648
    %v831 = vor.u32 1.1754944e-38, %v830
    %v832 = vsel %vm829, %v831, %v827
    %v833 = vmul.f32 1.0, %v832
    %v834 = vtanh.pop %v814
    %v835 = vmul.f32 %v833, 0.0
    %837 = vrot.lane.b32.xlu0 %v834, 64
    %v838 = vpop.permute.xlu0 %837
    %v840 = vmul.f32 %v833, %v838
    %842 = vrot.lane.b32.xlu0 %v840, 32
    %v843 = vpop.permute.xlu0 %842
    %v845 = vadd.f32 %v835, %v843
    %v846 = vtanh.pop %v845
    %848 = vrot.lane.b32.xlu0 %v846, 64
    %v849 = vpop.permute.xlu0 %848
    %v851 = vmul.f32 %v833, %v849
    %853 = vrot.lane.b32.xlu0 %v851, 32
    %v854 = vpop.permute.xlu0 %853
    %v855 = vsel %vm111, %v854, 0
    %857 = vmatpush.msra.mxu0 0.0
    %858 = vmatpush.msra.mxu0 0.0
    %859 = vmatpush.msra.mxu0 0.0
    %860 = vmatpush.msra.mxu0 0.0
    %861 = vmatpush.msra.mxu0 0.0
    %862 = vmatpush.msra.mxu0 0.0
    %863 = vmatpush.msra.mxu0 0.0
    %864 = vmatpush.msra.mxu0 0.0
    %865 = vmatpush.msra.mxu0 0.0
    %866 = vmatpush.msra.mxu0 0.0
    %867 = vmatpush.msra.mxu0 0.0
    %868 = vmatpush.msra.mxu0 0.0
    %869 = vmatpush.msra.mxu0 %v793
    %870 = vmatpush.msra.mxu0 %v792
    %871 = vmatpush.msra.mxu0 %v791
    %872 = vmatpush.msra.mxu0 %v790
    %873 = vmatmul.f32.gmra.mxu0 %v855
    %v874 = vpop.f32.mrf.mxu0
    %v875 = vadd.f32 0.0, %v874
    %876 = vdwg.mxu0
    %v877 = vadd.f32 %v770, %v875
    %v878 = vxor.u32 %v877, 2147483648
    %v879 = vmul.f32 %v878, 1.442695
    %v880 = vpow.pop %v879
    %v881 = vadd.f32 %v880, 1.0
    %v882 = vrcp.pop %v881
    %v883 = vmul.f32 %v881, %v882
    %v884 = vsub.f32 1.0, %v883
    %v885 = vmul.f32 %v882, %v884
    %v886 = vadd.f32 %v882, %v885
    %vm887 = vweird.f32 %v881
    %vm888 = vweird.f32 %v882
    %vm889 = vmor %vm887, %vm888
    %v890 = vsel %vm889, %v882, %v886
    %v891 = vand.u32 2147483647, %v881
    %vm892 = vcmp.eq.f32.partialorder %v891, 8.507059e+37
    %v893 = vand.u32 %v881, 2147483648
    %v894 = vor.u32 1.1754944e-38, %v893
    %v895 = vsel %vm892, %v894, %v890
    %v896 = vmul.f32 1.0, %v895
    %v897 = vtanh.pop %v877
    %v898 = vmul.f32 %v896, %v845
    %900 = vrot.lane.b32.xlu0 %v897, 64
    %v901 = vpop.permute.xlu0 %900
    %v903 = vmul.f32 %v896, %v901
    %905 = vrot.lane.b32.xlu0 %v903, 32
    %v906 = vpop.permute.xlu0 %905
    %v908 = vadd.f32 %v898, %v906
    %v909 = vtanh.pop %v908
    %911 = vrot.lane.b32.xlu0 %v909, 64
    %v912 = vpop.permute.xlu0 %911
    %v914 = vmul.f32 %v896, %v912
    %916 = vrot.lane.b32.xlu0 %v914, 32
    %v917 = vpop.permute.xlu0 %916
    %v918 = vsel %vm111, %v917, 0
    %920 = vmatpush.msra.mxu0 0.0
    %921 = vmatpush.msra.mxu0 0.0
    %922 = vmatpush.msra.mxu0 0.0
    %923 = vmatpush.msra.mxu0 0.0
    %924 = vmatpush.msra.mxu0 0.0
    %925 = vmatpush.msra.mxu0 0.0
    %926 = vmatpush.msra.mxu0 0.0
    %927 = vmatpush.msra.mxu0 0.0
    %928 = vmatpush.msra.mxu0 0.0
    %929 = vmatpush.msra.mxu0 0.0
    %930 = vmatpush.msra.mxu0 0.0
    %931 = vmatpush.msra.mxu0 0.0
    %932 = vmatpush.msra.mxu0 %v793
    %933 = vmatpush.msra.mxu0 %v792
    %934 = vmatpush.msra.mxu0 %v791
    %935 = vmatpush.msra.mxu0 %v790
    %936 = vmatmul.f32.gmra.mxu0 %v918
    %v937 = vpop.f32.mrf.mxu0
    %v938 = vadd.f32 0.0, %v937
    %939 = vdwg.mxu0
    %v940 = vadd.f32 %v773, %v938
    %v941 = vxor.u32 %v940, 2147483648
    %v942 = vmul.f32 %v941, 1.442695
    %v943 = vpow.pop %v942
    %v944 = vadd.f32 %v943, 1.0
    %v945 = vrcp.pop %v944
    %v946 = vmul.f32 %v944, %v945
    %v947 = vsub.f32 1.0, %v946
    %v948 = vmul.f32 %v945, %v947
    %v949 = vadd.f32 %v945, %v948
    %vm950 = vweird.f32 %v944
    %vm951 = vweird.f32 %v945
    %vm952 = vmor %vm950, %vm951
    %v953 = vsel %vm952, %v945, %v949
    %v954 = vand.u32 2147483647, %v944
    %vm955 = vcmp.eq.f32.partialorder %v954, 8.507059e+37
    %v956 = vand.u32 %v944, 2147483648
    %v957 = vor.u32 1.1754944e-38, %v956
    %v958 = vsel %vm955, %v957, %v953
    %v959 = vmul.f32 1.0, %v958
    %v960 = vtanh.pop %v940
    %v961 = vmul.f32 %v959, %v908
    %963 = vrot.lane.b32.xlu0 %v960, 64
    %v964 = vpop.permute.xlu0 %963
    %v966 = vmul.f32 %v959, %v964
    %968 = vrot.lane.b32.xlu0 %v966, 32
    %v969 = vpop.permute.xlu0 %968
    %v971 = vadd.f32 %v961, %v969
    %v972 = vtanh.pop %v971
    %974 = vrot.lane.b32.xlu0 %v972, 64
    %v975 = vpop.permute.xlu0 %974
    %v977 = vmul.f32 %v959, %v975
    %979 = vrot.lane.b32.xlu0 %v977, 32
    %v980 = vpop.permute.xlu0 %979
    %v981 = vsel %vm111, %v980, 0
    %983 = vmatpush.msra.mxu0 0.0
    %984 = vmatpush.msra.mxu0 0.0
    %985 = vmatpush.msra.mxu0 0.0
    %986 = vmatpush.msra.mxu0 0.0
    %987 = vmatpush.msra.mxu0 0.0
    %988 = vmatpush.msra.mxu0 0.0
    %989 = vmatpush.msra.mxu0 0.0
    %990 = vmatpush.msra.mxu0 0.0
    %991 = vmatpush.msra.mxu0 0.0
    %992 = vmatpush.msra.mxu0 0.0
    %993 = vmatpush.msra.mxu0 0.0
    %994 = vmatpush.msra.mxu0 0.0
    %995 = vmatpush.msra.mxu0 %v793
    %996 = vmatpush.msra.mxu0 %v792
    %997 = vmatpush.msra.mxu0 %v791
    %998 = vmatpush.msra.mxu0 %v790
    %999 = vmatmul.f32.gmra.mxu0 %v981
    %v1000 = vpop.f32.mrf.mxu0
    %v1001 = vadd.f32 0.0, %v1000
    %1002 = vdwg.mxu0
    %v1003 = vadd.f32 %v776, %v1001
    %v1004 = vxor.u32 %v1003, 2147483648
    %v1005 = vmul.f32 %v1004, 1.442695
    %v1006 = vpow.pop %v1005
    %v1007 = vadd.f32 %v1006, 1.0
    %v1008 = vrcp.pop %v1007
    %v1009 = vmul.f32 %v1007, %v1008
    %v1010 = vsub.f32 1.0, %v1009
    %v1011 = vmul.f32 %v1008, %v1010
    %v1012 = vadd.f32 %v1008, %v1011
    %vm1013 = vweird.f32 %v1007
    %vm1014 = vweird.f32 %v1008
    %vm1015 = vmor %vm1013, %vm1014
    %v1016 = vsel %vm1015, %v1008, %v1012
    %v1017 = vand.u32 2147483647, %v1007
    %vm1018 = vcmp.eq.f32.partialorder %v1017, 8.507059e+37
    %v1019 = vand.u32 %v1007, 2147483648
    %v1020 = vor.u32 1.1754944e-38, %v1019
    %v1021 = vsel %vm1018, %v1020, %v1016
    %v1022 = vmul.f32 1.0, %v1021
    %v1023 = vtanh.pop %v1003
    %v1024 = vmul.f32 %v1022, %v971
    %1026 = vrot.lane.b32.xlu0 %v1023, 64
    %v1027 = vpop.permute.xlu0 %1026
    %v1029 = vmul.f32 %v1022, %v1027
    %1031 = vrot.lane.b32.xlu0 %v1029, 32
    %v1032 = vpop.permute.xlu0 %1031
    %v1034 = vadd.f32 %v1024, %v1032
    %v1035 = vtanh.pop %v1034
    %1037 = vrot.lane.b32.xlu0 %v1035, 64
    %v1038 = vpop.permute.xlu0 %1037
    %v1040 = vmul.f32 %v1022, %v1038
    %1042 = vrot.lane.b32.xlu0 %v1040, 32
    %v1043 = vpop.permute.xlu0 %1042
    %v1044 = vsel %vm111, %v1043, 0
    %1046 = vmatpush.msra.mxu0 0.0
    %1047 = vmatpush.msra.mxu0 0.0
    %1048 = vmatpush.msra.mxu0 0.0
    %1049 = vmatpush.msra.mxu0 0.0
    %1050 = vmatpush.msra.mxu0 0.0
    %1051 = vmatpush.msra.mxu0 0.0
    %1052 = vmatpush.msra.mxu0 0.0
    %1053 = vmatpush.msra.mxu0 0.0
    %1054 = vmatpush.msra.mxu0 0.0
    %1055 = vmatpush.msra.mxu0 0.0
    %1056 = vmatpush.msra.mxu0 0.0
    %1057 = vmatpush.msra.mxu0 0.0
    %1058 = vmatpush.msra.mxu0 %v793
    %1059 = vmatpush.msra.mxu0 %v792
    %1060 = vmatpush.msra.mxu0 %v791
    %1061 = vmatpush.msra.mxu0 %v790
    %1062 = vmatmul.f32.gmra.mxu0 %v1044
    %v1063 = vpop.f32.mrf.mxu0
    %v1064 = vadd.f32 0.0, %v1063
    %1065 = vdwg.mxu0
    %v1066 = vadd.f32 %v779, %v1064
    %v1067 = vxor.u32 %v1066, 2147483648
    %v1068 = vmul.f32 %v1067, 1.442695
    %v1069 = vpow.pop %v1068
    %v1070 = vadd.f32 %v1069, 1.0
    %v1071 = vrcp.pop %v1070
    %v1072 = vmul.f32 %v1070, %v1071
    %v1073 = vsub.f32 1.0, %v1072
    %v1074 = vmul.f32 %v1071, %v1073
    %v1075 = vadd.f32 %v1071, %v1074
    %vm1076 = vweird.f32 %v1070
    %vm1077 = vweird.f32 %v1071
    %vm1078 = vmor %vm1076, %vm1077
    %v1079 = vsel %vm1078, %v1071, %v1075
    %v1080 = vand.u32 2147483647, %v1070
    %vm1081 = vcmp.eq.f32.partialorder %v1080, 8.507059e+37
    %v1082 = vand.u32 %v1070, 2147483648
    %v1083 = vor.u32 1.1754944e-38, %v1082
    %v1084 = vsel %vm1081, %v1083, %v1079
    %v1085 = vmul.f32 1.0, %v1084
    %v1086 = vtanh.pop %v1066
    %v1087 = vmul.f32 %v1085, %v1034
    %1089 = vrot.lane.b32.xlu0 %v1086, 64
    %v1090 = vpop.permute.xlu0 %1089
    %v1092 = vmul.f32 %v1085, %v1090
    %1094 = vrot.lane.b32.xlu0 %v1092, 32
    %v1095 = vpop.permute.xlu0 %1094
    %v1097 = vadd.f32 %v1087, %v1095
    %v1098 = vtanh.pop %v1097
    %1100 = vrot.lane.b32.xlu0 %v1098, 64
    %v1101 = vpop.permute.xlu0 %1100
    %v1103 = vmul.f32 %v1085, %v1101
    %1105 = vrot.lane.b32.xlu0 %v1103, 32
    %v1106 = vpop.permute.xlu0 %1105
    %v1107 = vsel %vm111, %v1106, 0
    %1109 = vmatpush.msra.mxu0 0.0
    %1110 = vmatpush.msra.mxu0 0.0
    %1111 = vmatpush.msra.mxu0 0.0
    %1112 = vmatpush.msra.mxu0 0.0
    %1113 = vmatpush.msra.mxu0 0.0
    %1114 = vmatpush.msra.mxu0 0.0
    %1115 = vmatpush.msra.mxu0 0.0
    %1116 = vmatpush.msra.mxu0 0.0
    %1117 = vmatpush.msra.mxu0 0.0
    %1118 = vmatpush.msra.mxu0 0.0
    %1119 = vmatpush.msra.mxu0 0.0
    %1120 = vmatpush.msra.mxu0 0.0
    %1121 = vmatpush.msra.mxu0 %v793
    %1122 = vmatpush.msra.mxu0 %v792
    %1123 = vmatpush.msra.mxu0 %v791
    %1124 = vmatpush.msra.mxu0 %v790
    %1125 = vmatmul.f32.gmra.mxu0 %v1107
    %v1126 = vpop.f32.mrf.mxu0
    %v1127 = vadd.f32 0.0, %v1126
    %1128 = vdwg.mxu0
    %v1129 = vadd.f32 %v782, %v1127
    %v1130 = vxor.u32 %v1129, 2147483648
    %v1131 = vmul.f32 %v1130, 1.442695
    %v1132 = vpow.pop %v1131
    %v1133 = vadd.f32 %v1132, 1.0
    %v1134 = vrcp.pop %v1133
    %v1135 = vmul.f32 %v1133, %v1134
    %v1136 = vsub.f32 1.0, %v1135
    %v1137 = vmul.f32 %v1134, %v1136
    %v1138 = vadd.f32 %v1134, %v1137
    %vm1139 = vweird.f32 %v1133
    %vm1140 = vweird.f32 %v1134
    %vm1141 = vmor %vm1139, %vm1140
    %v1142 = vsel %vm1141, %v1134, %v1138
    %v1143 = vand.u32 2147483647, %v1133
    %vm1144 = vcmp.eq.f32.partialorder %v1143, 8.507059e+37
    %v1145 = vand.u32 %v1133, 2147483648
    %v1146 = vor.u32 1.1754944e-38, %v1145
    %v1147 = vsel %vm1144, %v1146, %v1142
    %v1148 = vmul.f32 1.0, %v1147
    %v1149 = vtanh.pop %v1129
    %v1150 = vmul.f32 %v1148, %v1097
    %1152 = vrot.lane.b32.xlu0 %v1149, 64
    %v1153 = vpop.permute.xlu0 %1152
    %v1155 = vmul.f32 %v1148, %v1153
    %1157 = vrot.lane.b32.xlu0 %v1155, 32
    %v1158 = vpop.permute.xlu0 %1157
    %v1160 = vadd.f32 %v1150, %v1158
    %v1161 = vtanh.pop %v1160
    %1163 = vrot.lane.b32.xlu0 %v1161, 64
    %v1164 = vpop.permute.xlu0 %1163
    %v1166 = vmul.f32 %v1148, %v1164
    %1168 = vrot.lane.b32.xlu0 %v1166, 32
    %v1169 = vpop.permute.xlu0 %1168
    %v1170 = vsel %vm111, %v1169, 0
    %1172 = vmatpush.msra.mxu0 0.0
    %1173 = vmatpush.msra.mxu0 0.0
    %1174 = vmatpush.msra.mxu0 0.0
    %1175 = vmatpush.msra.mxu0 0.0
    %1176 = vmatpush.msra.mxu0 0.0
    %1177 = vmatpush.msra.mxu0 0.0
    %1178 = vmatpush.msra.mxu0 0.0
    %1179 = vmatpush.msra.mxu0 0.0
    %1180 = vmatpush.msra.mxu0 0.0
    %1181 = vmatpush.msra.mxu0 0.0
    %1182 = vmatpush.msra.mxu0 0.0
    %1183 = vmatpush.msra.mxu0 0.0
    %1184 = vmatpush.msra.mxu0 %v793
    %1185 = vmatpush.msra.mxu0 %v792
    %1186 = vmatpush.msra.mxu0 %v791
    %1187 = vmatpush.msra.mxu0 %v790
    %1188 = vmatmul.f32.gmra.mxu0 %v1170
    %v1189 = vpop.f32.mrf.mxu0
    %v1190 = vadd.f32 0.0, %v1189
    %1191 = vdwg.mxu0
    %v1192 = vadd.f32 %v785, %v1190
    %v1193 = vxor.u32 %v1192, 2147483648
    %v1194 = vmul.f32 %v1193, 1.442695
    %v1195 = vpow.pop %v1194
    %v1196 = vadd.f32 %v1195, 1.0
    %v1197 = vrcp.pop %v1196
    %v1198 = vmul.f32 %v1196, %v1197
    %v1199 = vsub.f32 1.0, %v1198
    %v1200 = vmul.f32 %v1197, %v1199
    %v1201 = vadd.f32 %v1197, %v1200
    %vm1202 = vweird.f32 %v1196
    %vm1203 = vweird.f32 %v1197
    %vm1204 = vmor %vm1202, %vm1203
    %v1205 = vsel %vm1204, %v1197, %v1201
    %v1206 = vand.u32 2147483647, %v1196
    %vm1207 = vcmp.eq.f32.partialorder %v1206, 8.507059e+37
    %v1208 = vand.u32 %v1196, 2147483648
    %v1209 = vor.u32 1.1754944e-38, %v1208
    %v1210 = vsel %vm1207, %v1209, %v1205
    %v1211 = vmul.f32 1.0, %v1210
    %v1212 = vtanh.pop %v1192
    %v1213 = vmul.f32 %v1211, %v1160
    %1215 = vrot.lane.b32.xlu0 %v1212, 64
    %v1216 = vpop.permute.xlu0 %1215
    %v1218 = vmul.f32 %v1211, %v1216
    %1220 = vrot.lane.b32.xlu0 %v1218, 32
    %v1221 = vpop.permute.xlu0 %1220
    %v1223 = vadd.f32 %v1213, %v1221
    %v1224 = vtanh.pop %v1223
    %1226 = vrot.lane.b32.xlu0 %v1224, 64
    %v1227 = vpop.permute.xlu0 %1226
    %v1229 = vmul.f32 %v1211, %v1227
    %1231 = vrot.lane.b32.xlu0 %v1229, 32
    %v1232 = vpop.permute.xlu0 %1231
    %v1233 = vsel %vm111, %v1232, 0
    %1235 = vmatpush.msra.mxu0 0.0
    %1236 = vmatpush.msra.mxu0 0.0
    %1237 = vmatpush.msra.mxu0 0.0
    %1238 = vmatpush.msra.mxu0 0.0
    %1239 = vmatpush.msra.mxu0 0.0
    %1240 = vmatpush.msra.mxu0 0.0
    %1241 = vmatpush.msra.mxu0 0.0
    %1242 = vmatpush.msra.mxu0 0.0
    %1243 = vmatpush.msra.mxu0 0.0
    %1244 = vmatpush.msra.mxu0 0.0
    %1245 = vmatpush.msra.mxu0 0.0
    %1246 = vmatpush.msra.mxu0 0.0
    %1247 = vmatpush.msra.mxu0 %v793
    %1248 = vmatpush.msra.mxu0 %v792
    %1249 = vmatpush.msra.mxu0 %v791
    %1250 = vmatpush.msra.mxu0 %v790
    %1251 = vmatmul.f32.gmra.mxu0 %v1233
    %v1252 = vpop.f32.mrf.mxu0
    %v1253 = vadd.f32 0.0, %v1252
    %1254 = vdwg.mxu0
    %v1255 = vadd.f32 %v788, %v1253
    %v1256 = vxor.u32 %v1255, 2147483648
    %v1257 = vmul.f32 %v1256, 1.442695
    %v1258 = vpow.pop %v1257
    %v1259 = vadd.f32 %v1258, 1.0
    %v1260 = vrcp.pop %v1259
    %v1261 = vmul.f32 %v1259, %v1260
    %v1262 = vsub.f32 1.0, %v1261
    %v1263 = vmul.f32 %v1260, %v1262
    %v1264 = vadd.f32 %v1260, %v1263
    %vm1265 = vweird.f32 %v1259
    %vm1266 = vweird.f32 %v1260
    %vm1267 = vmor %vm1265, %vm1266
    %v1268 = vsel %vm1267, %v1260, %v1264
    %v1269 = vand.u32 2147483647, %v1259
    %vm1270 = vcmp.eq.f32.partialorder %v1269, 8.507059e+37
    %v1271 = vand.u32 %v1259, 2147483648
    %v1272 = vor.u32 1.1754944e-38, %v1271
    %v1273 = vsel %vm1270, %v1272, %v1268
    %v1274 = vmul.f32 1.0, %v1273
    %v1275 = vtanh.pop %v1255
    %v1276 = vmul.f32 %v1274, %v1223
    %1278 = vrot.lane.b32.xlu0 %v1275, 64
    %v1279 = vpop.permute.xlu0 %1278
    %v1281 = vmul.f32 %v1274, %v1279
    %1283 = vrot.lane.b32.xlu0 %v1281, 32
    %v1284 = vpop.permute.xlu0 %1283
    %v1286 = vadd.f32 %v1276, %v1284
    %v1287 = vtanh.pop %v1286
    %1289 = vrot.lane.b32.xlu0 %v1287, 64
    %v1290 = vpop.permute.xlu0 %1289
    %v1292 = vmul.f32 %v1274, %v1290
    %v1293 = vld [vmem:[%s7] sm:$0xff]
    %v1294 = vld [vmem:[%s7 + $0x8] sm:$0xff]
    %v1295 = vld [vmem:[%s7 + $0x10] sm:$0xff]
    %v1296 = vld [vmem:[%s7 + $0x18] sm:$0xff]
    %v1297 = vld [vmem:[%s8] sm:$0x1]
    %v1299 = vperm.slane %v1297, 0
    %1302 = vrot.lane.b32.xlu0 %v1292, 32
    %v1303 = vpop.permute.xlu0 %1302
    %v1304 = vsel %vm111, %v1303, 0
    %1306 = vmatpush.msra.mxu0 0.0
    %1307 = vmatpush.msra.mxu0 0.0
    %1308 = vmatpush.msra.mxu0 0.0
    %1309 = vmatpush.msra.mxu0 0.0
    %1310 = vmatpush.msra.mxu0 0.0
    %1311 = vmatpush.msra.mxu0 0.0
    %1312 = vmatpush.msra.mxu0 0.0
    %1313 = vmatpush.msra.mxu0 0.0
    %1314 = vmatpush.msra.mxu0 0.0
    %1315 = vmatpush.msra.mxu0 0.0
    %1316 = vmatpush.msra.mxu0 0.0
    %1317 = vmatpush.msra.mxu0 0.0
    %1318 = vmatpush.msra.mxu0 %v1296
    %1319 = vmatpush.msra.mxu0 %v1295
    %1320 = vmatpush.msra.mxu0 %v1294
    %1321 = vmatpush.msra.mxu0 %v1293
    %1322 = vmatmul.f32.gmra.mxu0 %v1304
    %v1323 = vpop.f32.mrf.mxu0
    %v1324 = vadd.f32 %v1299, %v1323
    %1325 = vdwg.mxu0
    %vm1326 = vcmask 31744
    %1327 = vst.msk [vmem:[%s9] sm:$0xff] %vm1326, %v1324
    // Predicated region
    $region54: #{tpu_custom_call.1} parent=1 // pred_check
      _
    $region55: #{tpu_custom_call.1} parent=1 // pred_check_branch
      %1329 = sbr.rel (0) target = $region57
    $region56: #{tpu_custom_call.1} parent=1 // pred_region
      _
    $region57: #{tpu_custom_call.1} parent=1 // pred_fallthru
      _
    // Predicated region
    $region58: #{tpu_custom_call.1} parent=1 // pred_check
      _
    $region59: #{tpu_custom_call.1} parent=1 // pred_check_branch
      %1331 = sbr.rel (0) target = $region61
    $region60: #{tpu_custom_call.1} parent=1 // pred_region
      _
    $region61: #{tpu_custom_call.1} parent=1 // pred_fallthru
      _
    %1332 = vsyncpa [#allocation4], 1
    %1333 = vsyncpa [#allocation6], 1
    %1334 = vsyncpa [#allocation9], 1

</llo_original>
